<compile_context>
chip_gen: v5e
topology: v5e:2x2
jax: 0.10.0
libtpu: 0.0.40
codegen_flags: <defaults>
</compile_context>

<pallas_src>
import math
from functools import partial

import jax
import jax.numpy as jnp
from jax import lax
from jax.experimental import pallas as pl
from jax.experimental.pallas import tpu as pltpu


# ---------------------------------------------------------------------------
# Tiling helpers
# ---------------------------------------------------------------------------
_LANE = 128
_MAX_TK = 8192     # keeps the double-buffered bf16 B tile <= 16 MiB
_MAX_TN = 512      # >=2 N blocks for the 1024-channel stage (v7x megacore)
_MAX_TM = 256


def _round_up(x, m):
    return (x + m - 1) // m * m


def _tiles_kn(K, N):
    """Pick (Kp, TK, Np, TN): K is split into balanced 128-multiple tiles."""
    Kp = _round_up(K, _LANE)
    nk = -(-Kp // _MAX_TK)                       # ceil
    TK = _round_up(-(-Kp // nk), _LANE)
    Kp = nk * TK
    Np = _round_up(N, _LANE)
    TN = min(Np, _MAX_TN)
    Np = _round_up(Np, TN)
    return Kp, TK, Np, TN


def _tiles_m(M):
    Mp = _round_up(M, 16)                        # bf16 sublane packing
    TM = min(Mp, _MAX_TM)
    Mp = _round_up(Mp, TM)
    return Mp, TM


# ---------------------------------------------------------------------------
# Pallas kernel: tiled bf16 matmul, fused affine + residual + GELU epilogue
# ---------------------------------------------------------------------------
def _erf(x):
    # Abramowitz & Stegun 7.1.26 (|err| < 1.5e-7); exp runs on the EUP slot,
    # so the fused GELU is essentially free under the MXU drain.
    a1, a2, a3, a4, a5 = (0.254829592, -0.284496736, 1.421413741,
                          -1.453152027, 1.061405429)
    p = 0.3275911
    sgn = jnp.where(x < 0.0, -1.0, 1.0)
    z = jnp.abs(x)
    t = 1.0 / (1.0 + p * z)
    poly = t * (a1 + t * (a2 + t * (a3 + t * (a4 + t * a5))))
    return sgn * (1.0 - poly * jnp.exp(-z * z))


def _gelu(x):
    # exact (erf-based) GELU, matching nn.GELU() / F.gelu defaults.
    return 0.5 * x * (1.0 + _erf(x * 0.7071067811865476))


def _make_kernel(apply_gelu, has_residual):
    def finalize(acc, scale, shift, res):
        y = acc * scale + shift
        if has_residual:
            y = y + res
        if apply_gelu:
            y = _gelu(y)
        return y

    if has_residual:
        def kernel(a_ref, b_ref, s_ref, t_ref, r_ref, o_ref, acc_ref):
            @pl.when(pl.program_id(2) == 0)
            def _init():
                acc_ref[...] = jnp.zeros_like(acc_ref)

            acc_ref[...] += jnp.dot(a_ref[...], b_ref[...],
                                    preferred_element_type=jnp.float32)

            @pl.when(pl.program_id(2) == pl.num_programs(2) - 1)
            def _fin():
                o_ref[...] = finalize(acc_ref[...], s_ref[...], t_ref[...],
                                      r_ref[...]).astype(o_ref.dtype)
    else:
        def kernel(a_ref, b_ref, s_ref, t_ref, o_ref, acc_ref):
            @pl.when(pl.program_id(2) == 0)
            def _init():
                acc_ref[...] = jnp.zeros_like(acc_ref)

            acc_ref[...] += jnp.dot(a_ref[...], b_ref[...],
                                    preferred_element_type=jnp.float32)

            @pl.when(pl.program_id(2) == pl.num_programs(2) - 1)
            def _fin():
                o_ref[...] = finalize(acc_ref[...], s_ref[...], t_ref[...],
                                      None).astype(o_ref.dtype)
    return kernel


_KERNELS = {(g, r): _make_kernel(g, r) for g in (False, True) for r in (False, True)}


@partial(jax.jit, static_argnames=("TM", "TK", "TN", "apply_gelu"))
def _padded_matmul(a_p, b_p, scale_p, shift_p, res_p, *, TM, TK, TN, apply_gelu):
    """gelu?((a_p @ b_p) * scale + shift [+ res]) on the MXU, f32 output."""
    Mp, Kp = a_p.shape
    Np = b_p.shape[1]
    has_res = res_p is not None
    kernel = _KERNELS[(apply_gelu, has_res)]

    in_specs = [
        pl.BlockSpec((TM, TK), lambda i, j, k: (i, k)),     # A (bf16)
        pl.BlockSpec((TK, TN), lambda i, j, k: (k, j)),     # B (bf16)
        pl.BlockSpec((1, TN), lambda i, j, k: (0, j)),      # scale
        pl.BlockSpec((1, TN), lambda i, j, k: (0, j)),      # shift
    ]
    operands = [a_p, b_p, scale_p, shift_p]
    if has_res:
        in_specs.append(pl.BlockSpec((TM, TN), lambda i, j, k: (i, j)))
        operands.append(res_p)

    return pl.pallas_call(
        kernel,
        out_shape=jax.ShapeDtypeStruct((Mp, Np), jnp.float32),
        grid_spec=pltpu.PrefetchScalarGridSpec(
            num_scalar_prefetch=0,
            grid=(Mp // TM, Np // TN, Kp // TK),
            in_specs=in_specs,
            out_specs=pl.BlockSpec((TM, TN), lambda i, j, k: (i, j)),
            scratch_shapes=[pltpu.VMEM((TM, TN), jnp.float32)],
        ),
        compiler_params=pltpu.CompilerParams(
            dimension_semantics=("parallel", "parallel", "arbitrary"),
            vmem_limit_bytes=48 * 1024 * 1024),
    )(*operands)


# ---------------------------------------------------------------------------
# Conv3d prep (hoisted weight packing) and forward
# ---------------------------------------------------------------------------
def _bn_affine(bn, eps=1e-5):
    s = bn["gamma"] / jnp.sqrt(bn["var"] + eps)
    return s, bn["beta"] - bn["mean"] * s


def _prepare_conv(w, scale, shift, *, stride, padding):
    """One-time prep: (kd,kh,kw,Cin,Cout) weight -> padded bf16 (Kp,Np) matrix."""
    kd, kh, kw, cin, cout = (int(s) for s in w.shape)
    K = kd * kh * kw * cin
    Kp, TK, Np, TN = _tiles_kn(K, cout)
    B = jnp.pad(w.reshape(K, cout), ((0, Kp - K), (0, Np - cout)))
    return {
        "B": B.astype(jnp.bfloat16),
        "scale": jnp.pad(scale, (0, Np - cout)).reshape(1, Np).astype(jnp.float32),
        "shift": jnp.pad(shift, (0, Np - cout)).reshape(1, Np).astype(jnp.float32),
        "ksize": (kd, kh, kw), "cin": cin, "cout": cout,
        "stride": stride, "padding": padding,
        "K": K, "Kp": Kp, "TK": TK, "Np": Np, "TN": TN,
    }


def prepare_conv_bn(w, bn, *, stride, padding):
    s, t = _bn_affine(bn)
    return _prepare_conv(w, s, t, stride=stride, padding=padding)


def conv3d(x, prep, *, apply_gelu, residual=None):
    """Conv3d (PyTorch cross-correlation) + fused BN affine (+res)(+GELU).

    x: (N, D, H, W, Cin) f32; residual (optional): (N, Do, Ho, Wo, Cout) f32.
    """
    kd, kh, kw = prep["ksize"]
    cout = prep["cout"]
    s, p = prep["stride"], prep["padding"]
    n, d, h, w, _ = x.shape
    do = (d + 2 * p - kd) // s + 1
    ho = (h + 2 * p - kh) // s + 1
    wo = (w + 2 * p - kw) // s + 1

    # TODO(synk): im2col patches are still materialised by XLA (in bf16 to halve
    # the traffic); folding the tap loop into the Pallas grid would remove this
    # HBM round-trip entirely.
    xp = jnp.pad(x.astype(jnp.bfloat16),
                 ((0, 0), (p, p), (p, p), (p, p), (0, 0)))
    cols = []
    for a in range(kd):
        for b in range(kh):
            for c in range(kw):
                cols.append(xp[:, a:a + (do - 1) * s + 1:s,
                               b:b + (ho - 1) * s + 1:s,
                               c:c + (wo - 1) * s + 1:s, :])
    patches = cols[0] if len(cols) == 1 else jnp.concatenate(cols, axis=-1)

    M = n * do * ho * wo
    K = prep["K"]
    Mp, TM = _tiles_m(M)
    A = jnp.pad(patches.reshape(M, K), ((0, Mp - M), (0, prep["Kp"] - K)))

    res_p = None
    if residual is not None:
        R = residual.reshape(M, cout).astype(jnp.float32)
        res_p = jnp.pad(R, ((0, Mp - M), (0, prep["Np"] - cout)))

    out = _padded_matmul(A, prep["B"], prep["scale"], prep["shift"], res_p,
                         TM=TM, TK=prep["TK"], TN=prep["TN"],
                         apply_gelu=apply_gelu)
    return out[:M, :cout].reshape(n, do, ho, wo, cout)


def maxpool3d(x, k=3, s=2, p=1):
    # TODO(synk): MaxPool3d kept as lax.reduce_window (XLA) rather than Pallas.
    return lax.reduce_window(
        x, jnp.array(-jnp.inf, x.dtype), lax.max,
        window_dimensions=(1, k, k, k, 1),
        window_strides=(1, s, s, s, 1),
        padding=((0, 0), (p, p), (p, p), (p, p), (0, 0)))


# ---------------------------------------------------------------------------
# Deterministic parameter init
# ---------------------------------------------------------------------------
class KeyGen:
    def __init__(self, key):
        self.key = key
        self.i = 0

    def __call__(self):
        self.i += 1
        return jax.random.fold_in(self.key, self.i)


def init_conv(key, k, cin, cout):
    std = 1.0 / math.sqrt(k * k * k * cin)
    return jax.random.normal(key, (k, k, k, cin, cout), jnp.float32) * std


def init_bn(key, c):
    k1, k2, k3 = jax.random.split(key, 3)
    return {
        "gamma": 1.0 + 0.05 * jax.random.normal(k1, (c,), jnp.float32),
        "beta": 0.05 * jax.random.normal(k2, (c,), jnp.float32),
        "mean": 0.05 * jax.random.normal(k3, (c,), jnp.float32),
        "var": jnp.ones((c,), jnp.float32),
    }


# ---------------------------------------------------------------------------
# Modules (functional)
# ---------------------------------------------------------------------------
def init_resblock(kg, cin, cout, stride=1, downsample=False):
    p = {
        "c1": prepare_conv_bn(init_conv(kg(), 3, cin, cout), init_bn(kg(), cout),
                              stride=stride, padding=1),
        "c2": prepare_conv_bn(init_conv(kg(), 1, cout, cout), init_bn(kg(), cout),
                              stride=1, padding=0),
        "down": None,
    }
    if downsample:
        p["down"] = prepare_conv_bn(init_conv(kg(), 1, cin, cout),
                                    init_bn(kg(), cout),
                                    stride=stride, padding=0)
    return p


def resblock_fwd(p, x):
    h = conv3d(x, p["c1"], apply_gelu=True)                       # conv3+BN+GELU
    res = conv3d(x, p["down"], apply_gelu=False) if p["down"] is not None else x
    # 1x1 conv + BN + residual add + GELU, all in one kernel epilogue.
    return conv3d(h, p["c2"], apply_gelu=True, residual=res)


def init_reslayer(kg, cin, cout, n_blocks, stride=1):
    blocks = [init_resblock(kg, cin, cout, stride=stride, downsample=True)]
    for _ in range(1, n_blocks):
        blocks.append(init_resblock(kg, cout, cout))
    return blocks


def reslayer_fwd(blocks, x):
    for b in blocks:
        x = resblock_fwd(b, x)
    return x


def init_backbone(key):
    kg = KeyGen(key)
    return {
        "pre": prepare_conv_bn(init_conv(kg(), 7, 1, 64), init_bn(kg(), 64),
                               stride=2, padding=3),
        "layer1": init_reslayer(kg, 64, 128, 3),
        "layer2": init_reslayer(kg, 128, 256, 4, stride=2),
        "layer3": init_reslayer(kg, 256, 512, 4, stride=2),
        "layer4": init_reslayer(kg, 512, 1024, 4, stride=2),
    }


def backbone_fwd(p, x_ncdhw):
    """Backbone.forward: NCDHW input, returns (l1, l4) in NCDHW."""
    x = jnp.transpose(x_ncdhw, (0, 2, 3, 4, 1))                   # NCDHW -> NDHWC
    h = conv3d(x, p["pre"], apply_gelu=True)                      # conv7+BN+GELU
    h = maxpool3d(h, 3, 2, 1)
    l1 = reslayer_fwd(p["layer1"], h)
    l2 = reslayer_fwd(p["layer2"], l1)
    l3 = reslayer_fwd(p["layer3"], l2)
    l4 = reslayer_fwd(p["layer4"], l3)
    to_ncdhw = lambda t: jnp.transpose(t, (0, 4, 1, 2, 3))
    return to_ncdhw(l1), to_ncdhw(l4)


# ---------------------------------------------------------------------------
if __name__ == "__main__":
    key = jax.random.PRNGKey(0)
    params = init_backbone(key)
    # Small spatial size where every backbone stage (down to 1/32 resolution)
    # still has >= 1 voxel: input (N=2, C=1, 16, 16, 16).
    x = jax.random.normal(jax.random.fold_in(key, 99999),
                          (2, 1, 16, 16, 16), jnp.float32)
    l1, l4 = backbone_fwd(params, x)
    l1, l4 = jax.block_until_ready((l1, l4))
    assert l1.shape == (2, 128, 4, 4, 4), l1.shape
    assert l4.shape == (2, 1024, 1, 1, 1), l4.shape
    assert bool(jnp.isfinite(l1).all()) and bool(jnp.isfinite(l4).all())
    print("KERNEL_OK")
</pallas_src>

<mosaic_0001>
module attributes {stable_mosaic.version = 11 : i64} {
  func.func @kernel(%arg0: i32, %arg1: i32, %arg2: i32, %arg3: memref<256x384xbf16, #tpu.memory_space<vmem>>, %arg4: memref<384x128xbf16, #tpu.memory_space<vmem>>, %arg5: memref<1x128xf32, #tpu.memory_space<vmem>>, %arg6: memref<1x128xf32, #tpu.memory_space<vmem>>, %arg7: memref<256x128xf32, #tpu.memory_space<vmem>>, %arg8: memref<256x128xf32, #tpu.memory_space<vmem>>) attributes {dimension_semantics = [#tpu.dimension_semantics<parallel>, #tpu.dimension_semantics<parallel>, #tpu.dimension_semantics<arbitrary>], iteration_bounds = array<i64: 4, 1, 1>, scalar_prefetch = 0 : i64, scratch_operands = 1 : i64, tpu.core_type = #tpu.core_type<tc>, window_params = [{transform_indices = @transform_0, window_bounds = array<i64: 256, 384>}, {transform_indices = @transform_1, window_bounds = array<i64: 384, 128>}, {transform_indices = @transform_2, window_bounds = array<i64: 1, 128>}, {transform_indices = @transform_3, window_bounds = array<i64: 1, 128>}, {transform_indices = @transform_4, window_bounds = array<i64: 256, 128>}]} {
    %c0_i32 = arith.constant 0 : i32
    %0 = arith.cmpi eq, %arg2, %c0_i32 : i32
    %1 = arith.extui %0 : i1 to i32
    %c0_i32_0 = arith.constant 0 : i32
    %2 = arith.cmpi ne, %1, %c0_i32_0 : i32
    scf.if %2 {
      %cst_10 = arith.constant 0.000000e+00 : f32
      %12 = vector.broadcast %cst_10 : f32 to vector<256x128xf32>
      %c0_11 = arith.constant 0 : index
      %c0_12 = arith.constant 0 : index
      %13 = vector.load %arg8[%c0_11, %c0_12] : memref<256x128xf32, #tpu.memory_space<vmem>>, vector<256x128xf32>
      tpu.vector_store %arg8[%c0_11, %c0_12], %12 {strides = array<i32>} : memref<256x128xf32, #tpu.memory_space<vmem>>, vector<256x128xf32>,
    } else {
    }
    %c0 = arith.constant 0 : index
    %c0_1 = arith.constant 0 : index
    %3 = vector.load %arg8[%c0, %c0_1] : memref<256x128xf32, #tpu.memory_space<vmem>>, vector<256x128xf32>
    %c0_2 = arith.constant 0 : index
    %c0_3 = arith.constant 0 : index
    %4 = vector.load %arg3[%c0_2, %c0_3] : memref<256x384xbf16, #tpu.memory_space<vmem>>, vector<256x384xbf16>
    %c0_4 = arith.constant 0 : index
    %c0_5 = arith.constant 0 : index
    %5 = vector.load %arg4[%c0_4, %c0_5] : memref<384x128xbf16, #tpu.memory_space<vmem>>, vector<384x128xbf16>
    %cst = arith.constant dense<0.000000e+00> : vector<256x128xf32>
    %6 = tpu.matmul %4, %5, %cst {dimension_numbers = #tpu.dot_dimension_numbers<[1], [0], [0], [1], [0, 0, 1, 1], [], []>} : vector<256x384xbf16>, vector<384x128xbf16>, vector<256x128xf32> -> vector<256x128xf32>
    %7 = arith.addf %3, %6 : vector<256x128xf32>
    %c0_6 = arith.constant 0 : index
    %c0_7 = arith.constant 0 : index
    %8 = vector.load %arg8[%c0_6, %c0_7] : memref<256x128xf32, #tpu.memory_space<vmem>>, vector<256x128xf32>
    tpu.vector_store %arg8[%c0_6, %c0_7], %7 {strides = array<i32>} : memref<256x128xf32, #tpu.memory_space<vmem>>, vector<256x128xf32>,
    %c0_i32_8 = arith.constant 0 : i32
    %9 = arith.cmpi eq, %arg2, %c0_i32_8 : i32
    %10 = arith.extui %9 : i1 to i32
    %c0_i32_9 = arith.constant 0 : i32
    %11 = arith.cmpi ne, %10, %c0_i32_9 : i32
    scf.if %11 {
      %c0_10 = arith.constant 0 : index
      %c0_11 = arith.constant 0 : index
      %12 = vector.load %arg8[%c0_10, %c0_11] : memref<256x128xf32, #tpu.memory_space<vmem>>, vector<256x128xf32>
      %c0_12 = arith.constant 0 : index
      %c0_13 = arith.constant 0 : index
      %13 = vector.load %arg5[%c0_12, %c0_13] : memref<1x128xf32, #tpu.memory_space<vmem>>, vector<1x128xf32>
      %c0_14 = arith.constant 0 : index
      %c0_15 = arith.constant 0 : index
      %14 = vector.load %arg6[%c0_14, %c0_15] : memref<1x128xf32, #tpu.memory_space<vmem>>, vector<1x128xf32>
      %15 = vector.broadcast %13 : vector<1x128xf32> to vector<256x128xf32>
      %16 = arith.mulf %12, %15 : vector<256x128xf32>
      %17 = vector.broadcast %14 : vector<1x128xf32> to vector<256x128xf32>
      %18 = arith.addf %16, %17 : vector<256x128xf32>
      %cst_16 = arith.constant 5.000000e-01 : f32
      %19 = vector.broadcast %cst_16 : f32 to vector<256x128xf32>
      %20 = arith.mulf %19, %18 : vector<256x128xf32>
      %cst_17 = arith.constant 0.707106769 : f32
      %21 = vector.broadcast %cst_17 : f32 to vector<256x128xf32>
      %22 = arith.mulf %18, %21 : vector<256x128xf32>
      %cst_18 = arith.constant 0.000000e+00 : f32
      %23 = vector.broadcast %cst_18 : f32 to vector<256x128xf32>
      %24 = arith.cmpf olt, %22, %23 : vector<256x128xf32>
      %cst_19 = arith.constant -1.000000e+00 : f32
      %cst_20 = arith.constant 1.000000e+00 : f32
      %25 = vector.broadcast %cst_19 : f32 to vector<256x128xf32>
      %26 = vector.broadcast %cst_20 : f32 to vector<256x128xf32>
      %27 = arith.select %24, %25, %26 : vector<256x128xi1>, vector<256x128xf32>
      %28 = math.absf %22 : vector<256x128xf32>
      %cst_21 = arith.constant 0.327591091 : f32
      %29 = vector.broadcast %cst_21 : f32 to vector<256x128xf32>
      %30 = arith.mulf %29, %28 : vector<256x128xf32>
      %cst_22 = arith.constant 1.000000e+00 : f32
      %31 = vector.broadcast %cst_22 : f32 to vector<256x128xf32>
      %32 = arith.addf %31, %30 : vector<256x128xf32>
      %cst_23 = arith.constant 1.000000e+00 : f32
      %33 = vector.broadcast %cst_23 : f32 to vector<256x128xf32>
      %34 = arith.divf %33, %32 : vector<256x128xf32>
      %cst_24 = arith.constant 1.06140542 : f32
      %35 = vector.broadcast %cst_24 : f32 to vector<256x128xf32>
      %36 = arith.mulf %34, %35 : vector<256x128xf32>
      %cst_25 = arith.constant -1.45315206 : f32
      %37 = vector.broadcast %cst_25 : f32 to vector<256x128xf32>
      %38 = arith.addf %37, %36 : vector<256x128xf32>
      %39 = arith.mulf %34, %38 : vector<256x128xf32>
      %cst_26 = arith.constant 1.42141378 : f32
      %40 = vector.broadcast %cst_26 : f32 to vector<256x128xf32>
      %41 = arith.addf %40, %39 : vector<256x128xf32>
      %42 = arith.mulf %34, %41 : vector<256x128xf32>
      %cst_27 = arith.constant -0.284496725 : f32
      %43 = vector.broadcast %cst_27 : f32 to vector<256x128xf32>
      %44 = arith.addf %43, %42 : vector<256x128xf32>
      %45 = arith.mulf %34, %44 : vector<256x128xf32>
      %cst_28 = arith.constant 0.254829586 : f32
      %46 = vector.broadcast %cst_28 : f32 to vector<256x128xf32>
      %47 = arith.addf %46, %45 : vector<256x128xf32>
      %48 = arith.mulf %34, %47 : vector<256x128xf32>
      %cst_29 = arith.constant 0.000000e+00 : f32
      %49 = vector.broadcast %cst_29 : f32 to vector<256x128xf32>
      %50 = arith.subf %49, %28 : vector<256x128xf32>
      %51 = arith.mulf %50, %28 : vector<256x128xf32>
      %52 = math.exp %51 : vector<256x128xf32>
      %53 = arith.mulf %48, %52 : vector<256x128xf32>
      %cst_30 = arith.constant 1.000000e+00 : f32
      %54 = vector.broadcast %cst_30 : f32 to vector<256x128xf32>
      %55 = arith.subf %54, %53 : vector<256x128xf32>
      %56 = arith.mulf %27, %55 : vector<256x128xf32>
      %cst_31 = arith.constant 1.000000e+00 : f32
      %57 = vector.broadcast %cst_31 : f32 to vector<256x128xf32>
      %58 = arith.addf %57, %56 : vector<256x128xf32>
      %59 = arith.mulf %20, %58 : vector<256x128xf32>
      %c0_32 = arith.constant 0 : index
      %c0_33 = arith.constant 0 : index
      %60 = vector.load %arg7[%c0_32, %c0_33] : memref<256x128xf32, #tpu.memory_space<vmem>>, vector<256x128xf32>
      tpu.vector_store %arg7[%c0_32, %c0_33], %59 {strides = array<i32>} : memref<256x128xf32, #tpu.memory_space<vmem>>, vector<256x128xf32>,
    } else {
    }
    return
  }
  func.func @transform_0(%arg0: i32, %arg1: i32, %arg2: i32) -> (i32, i32) {
    %c0_i32 = arith.constant 0 : i32
    return %arg0, %arg2 : i32, i32
  }
  func.func @transform_1(%arg0: i32, %arg1: i32, %arg2: i32) -> (i32, i32) {
    %c0_i32 = arith.constant 0 : i32
    return %arg2, %arg1 : i32, i32
  }
  func.func @transform_2(%arg0: i32, %arg1: i32, %arg2: i32) -> (i32, i32) {
    %c0_i32 = arith.constant 0 : i32
    %c0_i32_0 = arith.constant 0 : i32
    return %c0_i32, %arg1 : i32, i32
  }
  func.func @transform_3(%arg0: i32, %arg1: i32, %arg2: i32) -> (i32, i32) {
    %c0_i32 = arith.constant 0 : i32
    %c0_i32_0 = arith.constant 0 : i32
    return %c0_i32, %arg1 : i32, i32
  }
  func.func @transform_4(%arg0: i32, %arg1: i32, %arg2: i32) -> (i32, i32) {
    %c0_i32 = arith.constant 0 : i32
    return %arg0, %arg1 : i32, i32
  }
}

</mosaic_0001>

<llo_original>
// kernel: _padded_matmul.1
$region0: #{_padded_matmul.1}
  #allocation0 [shape = 'u32[]', space=smem, size = 0x4, offset = 0x4, fixed_abs, tag = 'smem constant byte address 0x4 - core index']
  #allocation1 [shape = 'u32[72,128]{1,0:T(1,128)}', space=vmem, size = 0x9000, scoped, tag = 'internal scratch']
  #allocation2 [shape = 'f32[256,128]{1,0:T(8,128)}', space=vmem, size = 0x20000, scoped, tag = 'scratch operand']
  %s0 = inlined_call_operand.hbm [shape: bf16[1024,384], index: 0, kind: input, shape index: {}]
  %s1 = inlined_call_operand.hbm [shape: bf16[384,128], index: 1, kind: input, shape index: {}]
  %s2 = inlined_call_operand.vmem [shape: f32[1,128], index: 2, kind: input, shape index: {}]
  %s3 = inlined_call_operand.vmem [shape: f32[1,128], index: 3, kind: input, shape index: {}]
  %s4 = inlined_call_operand.hbm [shape: f32[1024,128], index: 4, kind: output, shape index: {}]
  %s5 = sld [smem:[#allocation0]]
  $region65: #{_padded_matmul.1} parent=0
    _
  %s7 = ssub.s32 1, %s5
  %s8 = scalar_select 0, %s7, %s5
  $region1: #{_padded_matmul.1} parent=0
    #allocation3 [shape = 'u8[393216]{0}', space=vmem, size = 0x60000, scoped, tag = 'input window, operand 0']
    #allocation4 [shape = 's32[2]{0}', space=sflag, size = 0x8, scoped, tag = 'scoped memory for _padded_matmul.1']
    #allocation5 [shape = 's32[2]{0}', space=sflag, size = 0x8, scoped, tag = 'scoped memory for _padded_matmul.1']
    #allocation6 [shape = 'u8[98304]{0}', space=vmem, size = 0x18000, scoped, tag = 'input window, operand 1, single buffered']
    #allocation7 [shape = 's32[1]{0}', space=sflag, size = 0x4, scoped, tag = 'scoped memory for _padded_matmul.1']
    #allocation8 [shape = 'u8[262144]{0}', space=vmem, size = 0x40000, scoped, tag = 'output window, operand 0']
    %9 = vsyncpa [#allocation4], 0
    %s10 = scalar_lea.sflag [#allocation4], 1
    %11 = vsyncpa %s10, 0
    %12 = vsyncpa [#allocation7], 0
    %13 = vsyncpa [#allocation5], 0
    %s14 = scalar_lea.sflag [#allocation5], 1
    %15 = vsyncpa %s14, 0
    loop: start=0, step=1, limit=6
    $region2: #{_padded_matmul.1} parent=1 // loop_pre_header
      _
    $region3: #{_padded_matmul.1} parent=1 // loop_header
      %s17 = sphi 0, %s21
      %p18 = scmp.ge.s32.totalorder %s17, 6
      %s24 = sphi 0, %s43
      %s25 = sphi 0, %s39
      %s26 = sphi 0, %s35
      %s27 = sphi 0, %s24
      %s28 = sphi 0, %s25
      %s29 = sphi 0, %s26
      %s30 = sphi 0, %s27
      %s31 = sphi 0, %s28
      %s32 = sphi 0, %s29
      %s48 = sphi 0, %s50
      %s51 = sphi 0, %s48
      %s52 = sphi 0, %s51
      %s68 = sphi 0, %s52
      %s76 = sphi 0, %s78
      %s79 = sphi 0, %s76
      %s80 = sphi 0, %s79
      %s96 = sphi 0, %s80
      %s102 = sphi 0, %s104
      %s105 = sphi 0, %s102
      %s106 = sphi 0, %s105
      %s122 = sphi 0, %s106
      %s128 = sphi 0, %s130
      %s131 = sphi 0, %s128
      %s132 = sphi 0, %s131
      %s148 = sphi 0, %s132
      %s156 = sphi 0, %s158
      %s159 = sphi 0, %s156
      %s160 = sphi 0, %s159
      %s176 = sphi 0, %s160
    $region4: #{_padded_matmul.1} parent=1 // loop_header_branch
      %20 = sbr.rel (%p18) target = $region8
    $region5: #{_padded_matmul.1} parent=1 // loop_body
      %s22 = ssub.s32 %s17, 1
      %s23 = ssub.s32 %s17, 2
      %s33 = sadd.s32 1, %s26
      %p34 = scmp.ge.s32.totalorder %s33, 1
      %s35 = scalar_select %p34, 0, %s33
      %s36 = sadd.s32 1, %s25
      %s37 = scalar_select %p34, %s36, %s25
      %p38 = scmp.ge.s32.totalorder %s37, 1
      %s39 = scalar_select %p38, 0, %s37
      %s40 = sadd.s32 1, %s24
      %s41 = scalar_select %p38, %s40, %s24
      %p42 = scmp.ge.s32.totalorder %s41, 4
      %s43 = scalar_select %p42, 0, %s41
      %s44 = ssub.s32 %s24, %s43
      %s45 = ssub.s32 %s26, %s35
      %s46 = sor.u32 %s44, %s45
      %p47 = scmp.eq.s32.totalorder %s46, 0
      %s49 = sadd.s32 %s48, 1
      %s50 = scalar_select %p47, %s48, %s49
      %p53 = pneg %p47
      %p54 = scmp.eq.s32.totalorder %s17, 3
      %p55 = por %p53, %p54
      %p56 = scmp.ne.s32.totalorder %s48, %s51
      %p57 = scmp.eq.s32.totalorder %s17, 0
      %p58 = por %p56, %p57
      %p59 = scmp.ne.s32.totalorder %s48, %s51
      %p60 = scmp.eq.s32.totalorder %s22, 3
      %p61 = por %p59, %p60
      %p62 = scmp.ne.s32.totalorder %s51, %s52
      %p63 = scmp.eq.s32.totalorder %s22, 0
      %p64 = por %p62, %p63
      %p65 = scmp.ne.s32.totalorder %s51, %s52
      %p66 = scmp.eq.s32.totalorder %s23, 3
      %p67 = por %p65, %p66
      %p69 = scmp.ne.s32.totalorder %s52, %s68
      %p70 = scmp.eq.s32.totalorder %s23, 0
      %p71 = por %p69, %p70
      %s72 = ssub.s32 %s26, %s35
      %s73 = ssub.s32 %s25, %s39
      %s74 = sor.u32 %s72, %s73
      %p75 = scmp.eq.s32.totalorder %s74, 0
      %s77 = sadd.s32 %s76, 1
      %s78 = scalar_select %p75, %s76, %s77
      %p81 = pneg %p75
      %p82 = scmp.eq.s32.totalorder %s17, 3
      %p83 = por %p81, %p82
      %p84 = scmp.ne.s32.totalorder %s76, %s79
      %p85 = scmp.eq.s32.totalorder %s17, 0
      %p86 = por %p84, %p85
      %p87 = scmp.ne.s32.totalorder %s76, %s79
      %p88 = scmp.eq.s32.totalorder %s22, 3
      %p89 = por %p87, %p88
      %p90 = scmp.ne.s32.totalorder %s79, %s80
      %p91 = scmp.eq.s32.totalorder %s22, 0
      %p92 = por %p90, %p91
      %p93 = scmp.ne.s32.totalorder %s79, %s80
      %p94 = scmp.eq.s32.totalorder %s23, 3
      %p95 = por %p93, %p94
      %p97 = scmp.ne.s32.totalorder %s80, %s96
      %p98 = scmp.eq.s32.totalorder %s23, 0
      %p99 = por %p97, %p98
      %s100 = ssub.s32 %s25, %s39
      %p101 = scmp.eq.s32.totalorder %s100, 0
      %s103 = sadd.s32 %s102, 1
      %s104 = scalar_select %p101, %s102, %s103
      %p107 = pneg %p101
      %p108 = scmp.eq.s32.totalorder %s17, 3
      %p109 = por %p107, %p108
      %p110 = scmp.ne.s32.totalorder %s102, %s105
      %p111 = scmp.eq.s32.totalorder %s17, 0
      %p112 = por %p110, %p111
      %p113 = scmp.ne.s32.totalorder %s102, %s105
      %p114 = scmp.eq.s32.totalorder %s22, 3
      %p115 = por %p113, %p114
      %p116 = scmp.ne.s32.totalorder %s105, %s106
      %p117 = scmp.eq.s32.totalorder %s22, 0
      %p118 = por %p116, %p117
      %p119 = scmp.ne.s32.totalorder %s105, %s106
      %p120 = scmp.eq.s32.totalorder %s23, 3
      %p121 = por %p119, %p120
      %p123 = scmp.ne.s32.totalorder %s106, %s122
      %p124 = scmp.eq.s32.totalorder %s23, 0
      %p125 = por %p123, %p124
      %s126 = ssub.s32 %s25, %s39
      %p127 = scmp.eq.s32.totalorder %s126, 0
      %s129 = sadd.s32 %s128, 1
      %s130 = scalar_select %p127, %s128, %s129
      %p133 = pneg %p127
      %p134 = scmp.eq.s32.totalorder %s17, 3
      %p135 = por %p133, %p134
      %p136 = scmp.ne.s32.totalorder %s128, %s131
      %p137 = scmp.eq.s32.totalorder %s17, 0
      %p138 = por %p136, %p137
      %p139 = scmp.ne.s32.totalorder %s128, %s131
      %p140 = scmp.eq.s32.totalorder %s22, 3
      %p141 = por %p139, %p140
      %p142 = scmp.ne.s32.totalorder %s131, %s132
      %p143 = scmp.eq.s32.totalorder %s22, 0
      %p144 = por %p142, %p143
      %p145 = scmp.ne.s32.totalorder %s131, %s132
      %p146 = scmp.eq.s32.totalorder %s23, 3
      %p147 = por %p145, %p146
      %p149 = scmp.ne.s32.totalorder %s132, %s148
      %p150 = scmp.eq.s32.totalorder %s23, 0
      %p151 = por %p149, %p150
      %s152 = ssub.s32 %s24, %s43
      %s153 = ssub.s32 %s25, %s39
      %s154 = sor.u32 %s152, %s153
      %p155 = scmp.eq.s32.totalorder %s154, 0
      %s157 = sadd.s32 %s156, 1
      %s158 = scalar_select %p155, %s156, %s157
      %p161 = pneg %p155
      %p162 = scmp.eq.s32.totalorder %s17, 3
      %p163 = por %p161, %p162
      %p164 = scmp.ne.s32.totalorder %s156, %s159
      %p165 = scmp.eq.s32.totalorder %s17, 0
      %p166 = por %p164, %p165
      %p167 = scmp.ne.s32.totalorder %s156, %s159
      %p168 = scmp.eq.s32.totalorder %s22, 3
      %p169 = por %p167, %p168
      %p170 = scmp.ne.s32.totalorder %s159, %s160
      %p171 = scmp.eq.s32.totalorder %s22, 0
      %p172 = por %p170, %p171
      %p173 = scmp.ne.s32.totalorder %s159, %s160
      %p174 = scmp.eq.s32.totalorder %s23, 3
      %p175 = por %p173, %p174
      %p177 = scmp.ne.s32.totalorder %s160, %s176
      %p178 = scmp.eq.s32.totalorder %s23, 0
      %p179 = por %p177, %p178
      %p180 = scmp.le.s32.totalorder 1, %s17
      %p181 = scmp.lt.s32.totalorder %s17, 5
      %p182 = pnand %p180, %p181
      %p183 = pneg %p182
      // Predicated region
      $region9: #{_padded_matmul.1} parent=5 // pred_check
        _
      $region10: #{_padded_matmul.1} parent=5 // pred_check_branch
        %185 = sbr.rel (%p182) target = $region12
      $region11: #{_padded_matmul.1} parent=5 // pred_region
        %s186 = ssub.s32 %s17, 1
        // Predicated region
        $region13: #{_padded_matmul.1} parent=11 // pred_check
          %p187 = pneg %p92
        $region14: #{_padded_matmul.1} parent=11 // pred_check_branch
          %189 = sbr.rel (%p187) target = $region16
        $region15: #{_padded_matmul.1} parent=11 // pred_region
          %s190 = smul.u32 48, %s29
          %192 = vsyncadd [#allocation7], 0
          %s193 = sadd.s32 %s28, %s190
          %s194 = smul.addr %s193, 4
          %s195 = scalar_lea.hbm %s1, %s194
          %s196 = sshll.u32 %s195, 4
          %s197 = int_to_ptr.hbm [resolvable:$true] %s196
          %s198 = sshll.u32 [#allocation6], 4
          %s199 = int_to_ptr.vmem [resolvable:$true] %s198
          %204 = dma.hbm_to_vmem [thread:$0]  %s197, 3072, %s199, [#allocation7], 64, 64, 4
        $region16: #{_padded_matmul.1} parent=11 // pred_fallthru
          _
        // Predicated region
        $region17: #{_padded_matmul.1} parent=11 // pred_check
          %p205 = pneg %p118
        $region18: #{_padded_matmul.1} parent=11 // pred_check_branch
          %207 = sbr.rel (%p205) target = $region20
        $region19: #{_padded_matmul.1} parent=11 // pred_region
          %p208 = scmp.lt.s32.totalorder %s28, 0
          %s209 = scalar_select %p208, %s28, 0
          %s210 = scalar_lea.vmem %s2, %s209
        $region20: #{_padded_matmul.1} parent=11 // pred_fallthru
          _
        // Predicated region
        $region21: #{_padded_matmul.1} parent=11 // pred_check
          %p211 = pneg %p144
        $region22: #{_padded_matmul.1} parent=11 // pred_check_branch
          %213 = sbr.rel (%p211) target = $region24
        $region23: #{_padded_matmul.1} parent=11 // pred_region
          %p214 = scmp.lt.s32.totalorder %s28, 0
          %s215 = scalar_select %p214, %s28, 0
          %s216 = scalar_lea.vmem %s3, %s215
        $region24: #{_padded_matmul.1} parent=11 // pred_fallthru
          _
      $region12: #{_padded_matmul.1} parent=5 // pred_fallthru
        _
      %p217 = scmp.lt.s32.totalorder %s17, 4
      // Predicated region
      $region25: #{_padded_matmul.1} parent=5 // pred_check
        %p218 = pneg %p217
      $region26: #{_padded_matmul.1} parent=5 // pred_check_branch
        %220 = sbr.rel (%p218) target = $region28
      $region27: #{_padded_matmul.1} parent=5 // pred_region
        // Predicated region
        $region29: #{_padded_matmul.1} parent=27 // pred_check
          %p221 = pneg %p58
        $region30: #{_padded_matmul.1} parent=27 // pred_check_branch
          %223 = sbr.rel (%p221) target = $region32
        $region31: #{_padded_matmul.1} parent=27 // pred_region
          %s224 = sand.u32 %s48, 1
          %s225 = scalar_lea.sflag [#allocation4], %s224
          %s226 = sand.u32 %s48, 1
          %s227 = smul.addr %s226, 384
          %s228 = scalar_lea.vmem [#allocation3], %s227
          %s229 = smul.u32 32, %s24
          %s230 = smul.u32 3, %s26
          %232 = vsyncadd %s225, 0
          %s233 = smul.addr %s229, 3
          %s234 = sadd.s32 %s230, %s233
          %s235 = smul.addr %s234, 4
          %s236 = scalar_lea.hbm %s0, %s235
          %s237 = sshll.u32 %s236, 4
          %s238 = int_to_ptr.hbm [resolvable:$true] %s237
          %s239 = sshll.u32 %s228, 4
          %s240 = int_to_ptr.vmem [resolvable:$true] %s239
          %245 = dma.hbm_to_vmem [thread:$0]  %s238, 6144, %s240, %s225, 192, 192, 12
        $region32: #{_padded_matmul.1} parent=27 // pred_fallthru
          _
      $region28: #{_padded_matmul.1} parent=5 // pred_fallthru
        _
      %p246 = scmp.le.s32.totalorder 1, %s17
      %p247 = scmp.lt.s32.totalorder %s17, 5
      %p248 = pnand %p246, %p247
      %p249 = pneg %p248
      // Predicated region
      $region33: #{_padded_matmul.1} parent=5 // pred_check
        _
      $region34: #{_padded_matmul.1} parent=5 // pred_check_branch
        %251 = sbr.rel (%p248) target = $region36
      $region35: #{_padded_matmul.1} parent=5 // pred_region
        %s252 = ssub.s32 %s17, 1
        %s253 = sand.u32 %s51, 1
        %s254 = scalar_lea.sflag [#allocation4], %s253
        %s255 = sand.u32 %s51, 1
        %s256 = smul.addr %s255, 384
        %s257 = scalar_lea.vmem [#allocation3], %s256
        // Predicated region
        $region37: #{_padded_matmul.1} parent=35 // pred_check
          %p258 = pneg %p64
        $region38: #{_padded_matmul.1} parent=35 // pred_check_branch
          %260 = sbr.rel (%p258) target = $region40
        $region39: #{_padded_matmul.1} parent=35 // pred_region
          %262 = dma.done %s254, 6144
        $region40: #{_padded_matmul.1} parent=35 // pred_fallthru
          _
        // Predicated region
        $region41: #{_padded_matmul.1} parent=35 // pred_check
          %p263 = pneg %p92
        $region42: #{_padded_matmul.1} parent=35 // pred_check_branch
          %265 = sbr.rel (%p263) target = $region44
        $region43: #{_padded_matmul.1} parent=35 // pred_region
          %267 = dma.done [#allocation7], 3072
        $region44: #{_padded_matmul.1} parent=35 // pred_fallthru
          _
        %s268 = sand.u32 %s51, 1
        %s269 = scalar_lea.sflag [#allocation4], %s268
        %s270 = sand.u32 %s51, 1
        %s271 = smul.addr %s270, 384
        %s272 = scalar_lea.vmem [#allocation3], %s271
        %p273 = pneg %p64
        %p274 = pneg %p61
        %p275 = pneg %p92
        %p276 = pneg %p89
        %p277 = scmp.lt.s32.totalorder %s28, 0
        %s278 = scalar_select %p277, %s28, 0
        %s279 = scalar_lea.vmem %s2, %s278
        %p280 = pneg %p118
        %p281 = pneg %p115
        %p282 = scmp.lt.s32.totalorder %s28, 0
        %s283 = scalar_select %p282, %s28, 0
        %s284 = scalar_lea.vmem %s3, %s283
        %p285 = pneg %p144
        %p286 = pneg %p141
        %p287 = pneg %p172
        %p288 = pneg %p169
        %s289 = sand.u32 %s159, 1
        %s290 = scalar_lea.sflag [#allocation5], %s289
        %s291 = sand.u32 %s159, 1
        %s292 = smul.addr %s291, 256
        %s293 = scalar_lea.vmem [#allocation8], %s292
        %s294 = smul.u32 32, %s27
        %s295 = smul.u32 3, %s29
        %s296 = smul.u32 48, %s29
        %p297 = scmp.lt.s32.totalorder %s28, 0
        %s298 = scalar_select %p297, %s28, 0
        %s299 = scalar_lea.vmem %s2, %s298
        %p300 = scmp.lt.s32.totalorder %s28, 0
        %s301 = scalar_select %p300, %s28, 0
        %s302 = scalar_lea.vmem %s3, %s301
        %s303 = smul.u32 32, %s27
        %p304 = scmp.eq.s32.totalorder %s29, 0
        // Predicated region
        $region45: #{_padded_matmul.1} parent=35 // pred_check
          %p305 = pneg %p304
        $region46: #{_padded_matmul.1} parent=35 // pred_check_branch
          %307 = sbr.rel (%p305) target = $region48
        $region47: #{_padded_matmul.1} parent=35 // pred_region
          %308 = vst [vmem:[#allocation2] sm:$0xff] 0.0
          %309 = vst [vmem:[#allocation2 + $0x8] sm:$0xff] 0.0
          %310 = vst [vmem:[#allocation2 + $0x10] sm:$0xff] 0.0
          %311 = vst [vmem:[#allocation2 + $0x18] sm:$0xff] 0.0
          %312 = vst [vmem:[#allocation2 + $0x20] sm:$0xff] 0.0
          %313 = vst [vmem:[#allocation2 + $0x28] sm:$0xff] 0.0
          %314 = vst [vmem:[#allocation2 + $0x30] sm:$0xff] 0.0
          %315 = vst [vmem:[#allocation2 + $0x38] sm:$0xff] 0.0
          %316 = vst [vmem:[#allocation2 + $0x40] sm:$0xff] 0.0
          %317 = vst [vmem:[#allocation2 + $0x48] sm:$0xff] 0.0
          %318 = vst [vmem:[#allocation2 + $0x50] sm:$0xff] 0.0
          %319 = vst [vmem:[#allocation2 + $0x58] sm:$0xff] 0.0
          %320 = vst [vmem:[#allocation2 + $0x60] sm:$0xff] 0.0
          %321 = vst [vmem:[#allocation2 + $0x68] sm:$0xff] 0.0
          %322 = vst [vmem:[#allocation2 + $0x70] sm:$0xff] 0.0
          %323 = vst [vmem:[#allocation2 + $0x78] sm:$0xff] 0.0
          %324 = vst [vmem:[#allocation2 + $0x80] sm:$0xff] 0.0
          %325 = vst [vmem:[#allocation2 + $0x88] sm:$0xff] 0.0
          %326 = vst [vmem:[#allocation2 + $0x90] sm:$0xff] 0.0
          %327 = vst [vmem:[#allocation2 + $0x98] sm:$0xff] 0.0
          %328 = vst [vmem:[#allocation2 + $0xa0] sm:$0xff] 0.0
          %329 = vst [vmem:[#allocation2 + $0xa8] sm:$0xff] 0.0
          %330 = vst [vmem:[#allocation2 + $0xb0] sm:$0xff] 0.0
          %331 = vst [vmem:[#allocation2 + $0xb8] sm:$0xff] 0.0
          %332 = vst [vmem:[#allocation2 + $0xc0] sm:$0xff] 0.0
          %333 = vst [vmem:[#allocation2 + $0xc8] sm:$0xff] 0.0
          %334 = vst [vmem:[#allocation2 + $0xd0] sm:$0xff] 0.0
          %335 = vst [vmem:[#allocation2 + $0xd8] sm:$0xff] 0.0
          %336 = vst [vmem:[#allocation2 + $0xe0] sm:$0xff] 0.0
          %337 = vst [vmem:[#allocation2 + $0xe8] sm:$0xff] 0.0
          %338 = vst [vmem:[#allocation2 + $0xf0] sm:$0xff] 0.0
          %339 = vst [vmem:[#allocation2 + $0xf8] sm:$0xff] 0.0
        $region48: #{_padded_matmul.1} parent=35 // pred_fallthru
          _
        %v340 = vld [vmem:[#allocation2] sm:$0xff]
        %v341 = vld [vmem:[#allocation2 + $0x8] sm:$0xff]
        %v342 = vld [vmem:[#allocation2 + $0x10] sm:$0xff]
        %v343 = vld [vmem:[#allocation2 + $0x18] sm:$0xff]
        %v344 = vld [vmem:[#allocation2 + $0x20] sm:$0xff]
        %v345 = vld [vmem:[#allocation2 + $0x28] sm:$0xff]
        %v346 = vld [vmem:[#allocation2 + $0x30] sm:$0xff]
        %v347 = vld [vmem:[#allocation2 + $0x38] sm:$0xff]
        %v348 = vld [vmem:[#allocation2 + $0x40] sm:$0xff]
        %v349 = vld [vmem:[#allocation2 + $0x48] sm:$0xff]
        %v350 = vld [vmem:[#allocation2 + $0x50] sm:$0xff]
        %v351 = vld [vmem:[#allocation2 + $0x58] sm:$0xff]
        %v352 = vld [vmem:[#allocation2 + $0x60] sm:$0xff]
        %v353 = vld [vmem:[#allocation2 + $0x68] sm:$0xff]
        %v354 = vld [vmem:[#allocation2 + $0x70] sm:$0xff]
        %v355 = vld [vmem:[#allocation2 + $0x78] sm:$0xff]
        %v356 = vld [vmem:[#allocation2 + $0x80] sm:$0xff]
        %v357 = vld [vmem:[#allocation2 + $0x88] sm:$0xff]
        %v358 = vld [vmem:[#allocation2 + $0x90] sm:$0xff]
        %v359 = vld [vmem:[#allocation2 + $0x98] sm:$0xff]
        %v360 = vld [vmem:[#allocation2 + $0xa0] sm:$0xff]
        %v361 = vld [vmem:[#allocation2 + $0xa8] sm:$0xff]
        %v362 = vld [vmem:[#allocation2 + $0xb0] sm:$0xff]
        %v363 = vld [vmem:[#allocation2 + $0xb8] sm:$0xff]
        %v364 = vld [vmem:[#allocation2 + $0xc0] sm:$0xff]
        %v365 = vld [vmem:[#allocation2 + $0xc8] sm:$0xff]
        %v366 = vld [vmem:[#allocation2 + $0xd0] sm:$0xff]
        %v367 = vld [vmem:[#allocation2 + $0xd8] sm:$0xff]
        %v368 = vld [vmem:[#allocation2 + $0xe0] sm:$0xff]
        %v369 = vld [vmem:[#allocation2 + $0xe8] sm:$0xff]
        %v370 = vld [vmem:[#allocation2 + $0xf0] sm:$0xff]
        %v371 = vld [vmem:[#allocation2 + $0xf8] sm:$0xff]
        %v372 = vld [vmem:[%s257] sm:$0xff]
        %v373 = vld [vmem:[%s257 + $0x8] sm:$0xf]
        %v374 = vld [vmem:[%s257 + $0xc] sm:$0xff]
        %v375 = vld [vmem:[%s257 + $0x14] sm:$0xf]
        %v376 = vld [vmem:[%s257 + $0x18] sm:$0xff]
        %v377 = vld [vmem:[%s257 + $0x20] sm:$0xf]
        %v378 = vld [vmem:[%s257 + $0x24] sm:$0xff]
        %v379 = vld [vmem:[%s257 + $0x2c] sm:$0xf]
        %v380 = vld [vmem:[%s257 + $0x30] sm:$0xff]
        %v381 = vld [vmem:[%s257 + $0x38] sm:$0xf]
        %v382 = vld [vmem:[%s257 + $0x3c] sm:$0xff]
        %v383 = vld [vmem:[%s257 + $0x44] sm:$0xf]
        %v384 = vld [vmem:[%s257 + $0x48] sm:$0xff]
        %v385 = vld [vmem:[%s257 + $0x50] sm:$0xf]
        %v386 = vld [vmem:[%s257 + $0x54] sm:$0xff]
        %v387 = vld [vmem:[%s257 + $0x5c] sm:$0xf]
        %v388 = vld [vmem:[%s257 + $0x60] sm:$0xff]
        %v389 = vld [vmem:[%s257 + $0x68] sm:$0xf]
        %v390 = vld [vmem:[%s257 + $0x6c] sm:$0xff]
        %v391 = vld [vmem:[%s257 + $0x74] sm:$0xf]
        %v392 = vld [vmem:[%s257 + $0x78] sm:$0xff]
        %v393 = vld [vmem:[%s257 + $0x80] sm:$0xf]
        %v394 = vld [vmem:[%s257 + $0x84] sm:$0xff]
        %v395 = vld [vmem:[%s257 + $0x8c] sm:$0xf]
        %v396 = vld [vmem:[%s257 + $0x90] sm:$0xff]
        %v397 = vld [vmem:[%s257 + $0x98] sm:$0xf]
        %v398 = vld [vmem:[%s257 + $0x9c] sm:$0xff]
        %v399 = vld [vmem:[%s257 + $0xa4] sm:$0xf]
        %v400 = vld [vmem:[%s257 + $0xa8] sm:$0xff]
        %v401 = vld [vmem:[%s257 + $0xb0] sm:$0xf]
        %v402 = vld [vmem:[%s257 + $0xb4] sm:$0xff]
        %v403 = vld [vmem:[%s257 + $0xbc] sm:$0xf]
        %v404 = vld [vmem:[%s257 + $0xc0] sm:$0xff]
        %v405 = vld [vmem:[%s257 + $0xc8] sm:$0xf]
        %v406 = vld [vmem:[%s257 + $0xcc] sm:$0xff]
        %v407 = vld [vmem:[%s257 + $0xd4] sm:$0xf]
        %v408 = vld [vmem:[%s257 + $0xd8] sm:$0xff]
        %v409 = vld [vmem:[%s257 + $0xe0] sm:$0xf]
        %v410 = vld [vmem:[%s257 + $0xe4] sm:$0xff]
        %v411 = vld [vmem:[%s257 + $0xec] sm:$0xf]
        %v412 = vld [vmem:[%s257 + $0xf0] sm:$0xff]
        %v413 = vld [vmem:[%s257 + $0xf8] sm:$0xf]
        %v414 = vld [vmem:[%s257 + $0xfc] sm:$0xff]
        %v415 = vld [vmem:[%s257 + $0x104] sm:$0xf]
        %v416 = vld [vmem:[%s257 + $0x108] sm:$0xff]
        %v417 = vld [vmem:[%s257 + $0x110] sm:$0xf]
        %v418 = vld [vmem:[%s257 + $0x114] sm:$0xff]
        %v419 = vld [vmem:[%s257 + $0x11c] sm:$0xf]
        %v420 = vld [vmem:[%s257 + $0x120] sm:$0xff]
        %v421 = vld [vmem:[%s257 + $0x128] sm:$0xf]
        %v422 = vld [vmem:[%s257 + $0x12c] sm:$0xff]
        %v423 = vld [vmem:[%s257 + $0x134] sm:$0xf]
        %v424 = vld [vmem:[%s257 + $0x138] sm:$0xff]
        %v425 = vld [vmem:[%s257 + $0x140] sm:$0xf]
        %v426 = vld [vmem:[%s257 + $0x144] sm:$0xff]
        %v427 = vld [vmem:[%s257 + $0x14c] sm:$0xf]
        %v428 = vld [vmem:[%s257 + $0x150] sm:$0xff]
        %v429 = vld [vmem:[%s257 + $0x158] sm:$0xf]
        %v430 = vld [vmem:[%s257 + $0x15c] sm:$0xff]
        %v431 = vld [vmem:[%s257 + $0x164] sm:$0xf]
        %v432 = vld [vmem:[%s257 + $0x168] sm:$0xff]
        %v433 = vld [vmem:[%s257 + $0x170] sm:$0xf]
        %v434 = vld [vmem:[%s257 + $0x174] sm:$0xff]
        %v435 = vld [vmem:[%s257 + $0x17c] sm:$0xf]
        %v436 = vld [vmem:[#allocation6] sm:$0xf]
        %v437 = vld [vmem:[#allocation6 + $0x4] sm:$0xf]
        %v438 = vld [vmem:[#allocation6 + $0x8] sm:$0xf]
        %v439 = vld [vmem:[#allocation6 + $0xc] sm:$0xf]
        %v440 = vld [vmem:[#allocation6 + $0x10] sm:$0xf]
        %v441 = vld [vmem:[#allocation6 + $0x14] sm:$0xf]
        %v442 = vld [vmem:[#allocation6 + $0x18] sm:$0xf]
        %v443 = vld [vmem:[#allocation6 + $0x1c] sm:$0xf]
        %v444 = vld [vmem:[#allocation6 + $0x20] sm:$0xf]
        %v445 = vld [vmem:[#allocation6 + $0x24] sm:$0xf]
        %v446 = vld [vmem:[#allocation6 + $0x28] sm:$0xf]
        %v447 = vld [vmem:[#allocation6 + $0x2c] sm:$0xf]
        %v448 = vld [vmem:[#allocation6 + $0x30] sm:$0xf]
        %v449 = vld [vmem:[#allocation6 + $0x34] sm:$0xf]
        %v450 = vld [vmem:[#allocation6 + $0x38] sm:$0xf]
        %v451 = vld [vmem:[#allocation6 + $0x3c] sm:$0xf]
        %v452 = vld [vmem:[#allocation6 + $0x40] sm:$0xf]
        %v453 = vld [vmem:[#allocation6 + $0x44] sm:$0xf]
        %v454 = vld [vmem:[#allocation6 + $0x48] sm:$0xf]
        %v455 = vld [vmem:[#allocation6 + $0x4c] sm:$0xf]
        %v456 = vld [vmem:[#allocation6 + $0x50] sm:$0xf]
        %v457 = vld [vmem:[#allocation6 + $0x54] sm:$0xf]
        %v458 = vld [vmem:[#allocation6 + $0x58] sm:$0xf]
        %v459 = vld [vmem:[#allocation6 + $0x5c] sm:$0xf]
        %v460 = vld [vmem:[#allocation6 + $0x60] sm:$0xf]
        %v461 = vld [vmem:[#allocation6 + $0x64] sm:$0xf]
        %v462 = vld [vmem:[#allocation6 + $0x68] sm:$0xf]
        %v463 = vld [vmem:[#allocation6 + $0x6c] sm:$0xf]
        %v464 = vld [vmem:[#allocation6 + $0x70] sm:$0xf]
        %v465 = vld [vmem:[#allocation6 + $0x74] sm:$0xf]
        %v466 = vld [vmem:[#allocation6 + $0x78] sm:$0xf]
        %v467 = vld [vmem:[#allocation6 + $0x7c] sm:$0xf]
        %v468 = vld [vmem:[#allocation6 + $0x80] sm:$0xf]
        %v469 = vld [vmem:[#allocation6 + $0x84] sm:$0xf]
        %v470 = vld [vmem:[#allocation6 + $0x88] sm:$0xf]
        %v471 = vld [vmem:[#allocation6 + $0x8c] sm:$0xf]
        %v472 = vld [vmem:[#allocation6 + $0x90] sm:$0xf]
        %v473 = vld [vmem:[#allocation6 + $0x94] sm:$0xf]
        %v474 = vld [vmem:[#allocation6 + $0x98] sm:$0xf]
        %v475 = vld [vmem:[#allocation6 + $0x9c] sm:$0xf]
        %v476 = vld [vmem:[#allocation6 + $0xa0] sm:$0xf]
        %v477 = vld [vmem:[#allocation6 + $0xa4] sm:$0xf]
        %v478 = vld [vmem:[#allocation6 + $0xa8] sm:$0xf]
        %v479 = vld [vmem:[#allocation6 + $0xac] sm:$0xf]
        %v480 = vld [vmem:[#allocation6 + $0xb0] sm:$0xf]
        %v481 = vld [vmem:[#allocation6 + $0xb4] sm:$0xf]
        %v482 = vld [vmem:[#allocation6 + $0xb8] sm:$0xf]
        %v483 = vld [vmem:[#allocation6 + $0xbc] sm:$0xf]
        %v548 = vunpack.c.l.b16 %v372
        %v549 = vunpack.c.h.b16 %v372
        %v550 = vunpack.c.l.b16 %v373
        %v551 = vunpack.c.l.b16 %v374
        %v552 = vunpack.c.h.b16 %v374
        %v553 = vunpack.c.l.b16 %v375
        %v554 = vunpack.c.l.b16 %v376
        %v555 = vunpack.c.h.b16 %v376
        %v556 = vunpack.c.l.b16 %v377
        %v557 = vunpack.c.l.b16 %v378
        %v558 = vunpack.c.h.b16 %v378
        %v559 = vunpack.c.l.b16 %v379
        %v560 = vunpack.c.l.b16 %v380
        %v561 = vunpack.c.h.b16 %v380
        %v562 = vunpack.c.l.b16 %v381
        %v563 = vunpack.c.l.b16 %v382
        %v564 = vunpack.c.h.b16 %v382
        %v565 = vunpack.c.l.b16 %v383
        %v566 = vunpack.c.l.b16 %v384
        %v567 = vunpack.c.h.b16 %v384
        %v568 = vunpack.c.l.b16 %v385
        %v569 = vunpack.c.l.b16 %v386
        %v570 = vunpack.c.h.b16 %v386
        %v571 = vunpack.c.l.b16 %v387
        %v572 = vunpack.c.l.b16 %v388
        %v573 = vunpack.c.h.b16 %v388
        %v574 = vunpack.c.l.b16 %v389
        %v575 = vunpack.c.l.b16 %v390
        %v576 = vunpack.c.h.b16 %v390
        %v577 = vunpack.c.l.b16 %v391
        %v578 = vunpack.c.l.b16 %v392
        %v579 = vunpack.c.h.b16 %v392
        %v580 = vunpack.c.l.b16 %v393
        %v581 = vunpack.c.l.b16 %v394
        %v582 = vunpack.c.h.b16 %v394
        %v583 = vunpack.c.l.b16 %v395
        %v584 = vunpack.c.l.b16 %v396
        %v585 = vunpack.c.h.b16 %v396
        %v586 = vunpack.c.l.b16 %v397
        %v587 = vunpack.c.l.b16 %v398
        %v588 = vunpack.c.h.b16 %v398
        %v589 = vunpack.c.l.b16 %v399
        %v590 = vunpack.c.l.b16 %v400
        %v591 = vunpack.c.h.b16 %v400
        %v592 = vunpack.c.l.b16 %v401
        %v593 = vunpack.c.l.b16 %v402
        %v594 = vunpack.c.h.b16 %v402
        %v595 = vunpack.c.l.b16 %v403
        %v596 = vunpack.c.l.b16 %v404
        %v597 = vunpack.c.h.b16 %v404
        %v598 = vunpack.c.l.b16 %v405
        %v599 = vunpack.c.l.b16 %v406
        %v600 = vunpack.c.h.b16 %v406
        %v601 = vunpack.c.l.b16 %v407
        %v602 = vunpack.c.l.b16 %v408
        %v603 = vunpack.c.h.b16 %v408
        %v604 = vunpack.c.l.b16 %v409
        %v605 = vunpack.c.l.b16 %v410
        %v606 = vunpack.c.h.b16 %v410
        %v607 = vunpack.c.l.b16 %v411
        %v608 = vunpack.c.l.b16 %v412
        %v609 = vunpack.c.h.b16 %v412
        %v610 = vunpack.c.l.b16 %v413
        %v611 = vunpack.c.l.b16 %v414
        %v612 = vunpack.c.h.b16 %v414
        %v613 = vunpack.c.l.b16 %v415
        %v614 = vunpack.c.l.b16 %v416
        %v615 = vunpack.c.h.b16 %v416
        %v616 = vunpack.c.l.b16 %v417
        %v617 = vunpack.c.l.b16 %v418
        %v618 = vunpack.c.h.b16 %v418
        %v619 = vunpack.c.l.b16 %v419
        %v620 = vunpack.c.l.b16 %v420
        %v621 = vunpack.c.h.b16 %v420
        %v622 = vunpack.c.l.b16 %v421
        %v623 = vunpack.c.l.b16 %v422
        %v624 = vunpack.c.h.b16 %v422
        %v625 = vunpack.c.l.b16 %v423
        %v626 = vunpack.c.l.b16 %v424
        %v627 = vunpack.c.h.b16 %v424
        %v628 = vunpack.c.l.b16 %v425
        %v629 = vunpack.c.l.b16 %v426
        %v630 = vunpack.c.h.b16 %v426
        %v631 = vunpack.c.l.b16 %v427
        %v632 = vunpack.c.l.b16 %v428
        %v633 = vunpack.c.h.b16 %v428
        %v634 = vunpack.c.l.b16 %v429
        %v635 = vunpack.c.l.b16 %v430
        %v636 = vunpack.c.h.b16 %v430
        %v637 = vunpack.c.l.b16 %v431
        %v638 = vunpack.c.l.b16 %v432
        %v639 = vunpack.c.h.b16 %v432
        %v640 = vunpack.c.l.b16 %v433
        %v641 = vunpack.c.l.b16 %v434
        %v642 = vunpack.c.h.b16 %v434
        %v643 = vunpack.c.l.b16 %v435
        %v644 = vpack.c.b16 %v551, %v548
        %v645 = vpack.c.b16 %v552, %v549
        %v646 = vpack.c.b16 %v553, %v550
        %v647 = vpack.c.b16 %v557, %v554
        %v648 = vpack.c.b16 %v558, %v555
        %v649 = vpack.c.b16 %v559, %v556
        %v650 = vpack.c.b16 %v563, %v560
        %v651 = vpack.c.b16 %v564, %v561
        %v652 = vpack.c.b16 %v565, %v562
        %v653 = vpack.c.b16 %v569, %v566
        %v654 = vpack.c.b16 %v570, %v567
        %v655 = vpack.c.b16 %v571, %v568
        %v656 = vpack.c.b16 %v575, %v572
        %v657 = vpack.c.b16 %v576, %v573
        %v658 = vpack.c.b16 %v577, %v574
        %v659 = vpack.c.b16 %v581, %v578
        %v660 = vpack.c.b16 %v582, %v579
        %v661 = vpack.c.b16 %v583, %v580
        %v662 = vpack.c.b16 %v587, %v584
        %v663 = vpack.c.b16 %v588, %v585
        %v664 = vpack.c.b16 %v589, %v586
        %v665 = vpack.c.b16 %v593, %v590
        %v666 = vpack.c.b16 %v594, %v591
        %v667 = vpack.c.b16 %v595, %v592
        %v668 = vpack.c.b16 %v599, %v596
        %v669 = vpack.c.b16 %v600, %v597
        %v670 = vpack.c.b16 %v601, %v598
        %v671 = vpack.c.b16 %v605, %v602
        %v672 = vpack.c.b16 %v606, %v603
        %v673 = vpack.c.b16 %v607, %v604
        %v674 = vpack.c.b16 %v611, %v608
        %v675 = vpack.c.b16 %v612, %v609
        %v676 = vpack.c.b16 %v613, %v610
        %v677 = vpack.c.b16 %v617, %v614
        %v678 = vpack.c.b16 %v618, %v615
        %v679 = vpack.c.b16 %v619, %v616
        %v680 = vpack.c.b16 %v623, %v620
        %v681 = vpack.c.b16 %v624, %v621
        %v682 = vpack.c.b16 %v625, %v622
        %v683 = vpack.c.b16 %v629, %v626
        %v684 = vpack.c.b16 %v630, %v627
        %v685 = vpack.c.b16 %v631, %v628
        %v686 = vpack.c.b16 %v635, %v632
        %v687 = vpack.c.b16 %v636, %v633
        %v688 = vpack.c.b16 %v637, %v634
        %v689 = vpack.c.b16 %v641, %v638
        %v690 = vpack.c.b16 %v642, %v639
        %v691 = vpack.c.b16 %v643, %v640
        %v788 = vunpack.c.l.b16 %v436
        %v789 = vunpack.c.l.b16 %v437
        %v790 = vunpack.c.l.b16 %v438
        %v791 = vunpack.c.l.b16 %v439
        %v792 = vunpack.c.l.b16 %v440
        %v793 = vunpack.c.l.b16 %v441
        %v794 = vunpack.c.l.b16 %v442
        %v795 = vunpack.c.l.b16 %v443
        %v796 = vunpack.c.l.b16 %v444
        %v797 = vunpack.c.l.b16 %v445
        %v798 = vunpack.c.l.b16 %v446
        %v799 = vunpack.c.l.b16 %v447
        %v800 = vunpack.c.l.b16 %v448
        %v801 = vunpack.c.l.b16 %v449
        %v802 = vunpack.c.l.b16 %v450
        %v803 = vunpack.c.l.b16 %v451
        %v804 = vunpack.c.l.b16 %v452
        %v805 = vunpack.c.l.b16 %v453
        %v806 = vunpack.c.l.b16 %v454
        %v807 = vunpack.c.l.b16 %v455
        %v808 = vunpack.c.l.b16 %v456
        %v809 = vunpack.c.l.b16 %v457
        %v810 = vunpack.c.l.b16 %v458
        %v811 = vunpack.c.l.b16 %v459
        %v812 = vunpack.c.l.b16 %v460
        %v813 = vunpack.c.l.b16 %v461
        %v814 = vunpack.c.l.b16 %v462
        %v815 = vunpack.c.l.b16 %v463
        %v816 = vunpack.c.l.b16 %v464
        %v817 = vunpack.c.l.b16 %v465
        %v818 = vunpack.c.l.b16 %v466
        %v819 = vunpack.c.l.b16 %v467
        %v820 = vunpack.c.l.b16 %v468
        %v821 = vunpack.c.l.b16 %v469
        %v822 = vunpack.c.l.b16 %v470
        %v823 = vunpack.c.l.b16 %v471
        %v824 = vunpack.c.l.b16 %v472
        %v825 = vunpack.c.l.b16 %v473
        %v826 = vunpack.c.l.b16 %v474
        %v827 = vunpack.c.l.b16 %v475
        %v828 = vunpack.c.l.b16 %v476
        %v829 = vunpack.c.l.b16 %v477
        %v830 = vunpack.c.l.b16 %v478
        %v831 = vunpack.c.l.b16 %v479
        %v832 = vunpack.c.l.b16 %v480
        %v833 = vunpack.c.l.b16 %v481
        %v834 = vunpack.c.l.b16 %v482
        %v835 = vunpack.c.l.b16 %v483
        %v836 = vpack.c.b16 %v789, %v788
        %v837 = vpack.c.b16 %v791, %v790
        %v838 = vpack.c.b16 %v793, %v792
        %v839 = vpack.c.b16 %v795, %v794
        %v840 = vpack.c.b16 %v797, %v796
        %v841 = vpack.c.b16 %v799, %v798
        %v842 = vpack.c.b16 %v801, %v800
        %v843 = vpack.c.b16 %v803, %v802
        %v844 = vpack.c.b16 %v805, %v804
        %v845 = vpack.c.b16 %v807, %v806
        %v846 = vpack.c.b16 %v809, %v808
        %v847 = vpack.c.b16 %v811, %v810
        %v848 = vpack.c.b16 %v813, %v812
        %v849 = vpack.c.b16 %v815, %v814
        %v850 = vpack.c.b16 %v817, %v816
        %v851 = vpack.c.b16 %v819, %v818
        %v852 = vpack.c.b16 %v821, %v820
        %v853 = vpack.c.b16 %v823, %v822
        %v854 = vpack.c.b16 %v825, %v824
        %v855 = vpack.c.b16 %v827, %v826
        %v856 = vpack.c.b16 %v829, %v828
        %v857 = vpack.c.b16 %v831, %v830
        %v858 = vpack.c.b16 %v833, %v832
        %v859 = vpack.c.b16 %v835, %v834
        %884 = vmatpush.bf16.msra.mxu0 %v843
        %885 = vmatpush.bf16.msra.mxu0 %v842
        %886 = vmatpush.bf16.msra.mxu0 %v841
        %887 = vmatpush.bf16.msra.mxu0 %v840
        %888 = vmatpush.bf16.msra.mxu0 %v839
        %889 = vmatpush.bf16.msra.mxu0 %v838
        %890 = vmatpush.bf16.msra.mxu0 %v837
        %891 = vmatpush.bf16.msra.mxu0 %v836
        %892 = vmatmul.bf16.gmra.mxu0 %v644
        %v893 = vpop.f32.mrf.mxu0
        %v894 = vadd.f32 0.0, %v893
        %v895 = vpop.f32.mrf.mxu0
        %v896 = vadd.f32 0.0, %v895
        %897 = vmatmul.bf16.gmra.mxu0 %v647
        %v898 = vpop.f32.mrf.mxu0
        %v899 = vadd.f32 0.0, %v898
        %v900 = vpop.f32.mrf.mxu0
        %v901 = vadd.f32 0.0, %v900
        %902 = vmatmul.bf16.gmra.mxu0 %v650
        %v903 = vpop.f32.mrf.mxu0
        %v904 = vadd.f32 0.0, %v903
        %v905 = vpop.f32.mrf.mxu0
        %v906 = vadd.f32 0.0, %v905
        %907 = vmatmul.bf16.gmra.mxu0 %v653
        %v908 = vpop.f32.mrf.mxu0
        %v909 = vadd.f32 0.0, %v908
        %v910 = vpop.f32.mrf.mxu0
        %v911 = vadd.f32 0.0, %v910
        %912 = vmatmul.bf16.gmra.mxu0 %v656
        %v913 = vpop.f32.mrf.mxu0
        %v914 = vadd.f32 0.0, %v913
        %v915 = vpop.f32.mrf.mxu0
        %v916 = vadd.f32 0.0, %v915
        %917 = vmatmul.bf16.gmra.mxu0 %v659
        %v918 = vpop.f32.mrf.mxu0
        %v919 = vadd.f32 0.0, %v918
        %v920 = vpop.f32.mrf.mxu0
        %v921 = vadd.f32 0.0, %v920
        %922 = vmatmul.bf16.gmra.mxu0 %v662
        %v923 = vpop.f32.mrf.mxu0
        %v924 = vadd.f32 0.0, %v923
        %v925 = vpop.f32.mrf.mxu0
        %v926 = vadd.f32 0.0, %v925
        %927 = vmatmul.bf16.gmra.mxu0 %v665
        %v928 = vpop.f32.mrf.mxu0
        %v929 = vadd.f32 0.0, %v928
        %v930 = vpop.f32.mrf.mxu0
        %v931 = vadd.f32 0.0, %v930
        %932 = vmatmul.bf16.gmra.mxu0 %v668
        %v933 = vpop.f32.mrf.mxu0
        %v934 = vadd.f32 0.0, %v933
        %v935 = vpop.f32.mrf.mxu0
        %v936 = vadd.f32 0.0, %v935
        %937 = vmatmul.bf16.gmra.mxu0 %v671
        %v938 = vpop.f32.mrf.mxu0
        %v939 = vadd.f32 0.0, %v938
        %v940 = vpop.f32.mrf.mxu0
        %v941 = vadd.f32 0.0, %v940
        %942 = vmatmul.bf16.gmra.mxu0 %v674
        %v943 = vpop.f32.mrf.mxu0
        %v944 = vadd.f32 0.0, %v943
        %v945 = vpop.f32.mrf.mxu0
        %v946 = vadd.f32 0.0, %v945
        %947 = vmatmul.bf16.gmra.mxu0 %v677
        %v948 = vpop.f32.mrf.mxu0
        %v949 = vadd.f32 0.0, %v948
        %v950 = vpop.f32.mrf.mxu0
        %v951 = vadd.f32 0.0, %v950
        %952 = vmatmul.bf16.gmra.mxu0 %v680
        %v953 = vpop.f32.mrf.mxu0
        %v954 = vadd.f32 0.0, %v953
        %v955 = vpop.f32.mrf.mxu0
        %v956 = vadd.f32 0.0, %v955
        %957 = vmatmul.bf16.gmra.mxu0 %v683
        %v958 = vpop.f32.mrf.mxu0
        %v959 = vadd.f32 0.0, %v958
        %v960 = vpop.f32.mrf.mxu0
        %v961 = vadd.f32 0.0, %v960
        %962 = vmatmul.bf16.gmra.mxu0 %v686
        %v963 = vpop.f32.mrf.mxu0
        %v964 = vadd.f32 0.0, %v963
        %v965 = vpop.f32.mrf.mxu0
        %v966 = vadd.f32 0.0, %v965
        %967 = vmatmul.bf16.gmra.mxu0 %v689
        %v968 = vpop.f32.mrf.mxu0
        %v969 = vadd.f32 0.0, %v968
        %v970 = vpop.f32.mrf.mxu0
        %v971 = vadd.f32 0.0, %v970
        %972 = vdwg.mxu0
        %973 = vmatpush.bf16.msra.mxu0 %v851
        %974 = vmatpush.bf16.msra.mxu0 %v850
        %975 = vmatpush.bf16.msra.mxu0 %v849
        %976 = vmatpush.bf16.msra.mxu0 %v848
        %977 = vmatpush.bf16.msra.mxu0 %v847
        %978 = vmatpush.bf16.msra.mxu0 %v846
        %979 = vmatpush.bf16.msra.mxu0 %v845
        %980 = vmatpush.bf16.msra.mxu0 %v844
        %981 = vmatmul.bf16.gmra.mxu0 %v645
        %v982 = vpop.f32.mrf.mxu0
        %v983 = vadd.f32 %v894, %v982
        %v984 = vpop.f32.mrf.mxu0
        %v985 = vadd.f32 %v896, %v984
        %986 = vmatmul.bf16.gmra.mxu0 %v648
        %v987 = vpop.f32.mrf.mxu0
        %v988 = vadd.f32 %v899, %v987
        %v989 = vpop.f32.mrf.mxu0
        %v990 = vadd.f32 %v901, %v989
        %991 = vmatmul.bf16.gmra.mxu0 %v651
        %v992 = vpop.f32.mrf.mxu0
        %v993 = vadd.f32 %v904, %v992
        %v994 = vpop.f32.mrf.mxu0
        %v995 = vadd.f32 %v906, %v994
        %996 = vmatmul.bf16.gmra.mxu0 %v654
        %v997 = vpop.f32.mrf.mxu0
        %v998 = vadd.f32 %v909, %v997
        %v999 = vpop.f32.mrf.mxu0
        %v1000 = vadd.f32 %v911, %v999
        %1001 = vmatmul.bf16.gmra.mxu0 %v657
        %v1002 = vpop.f32.mrf.mxu0
        %v1003 = vadd.f32 %v914, %v1002
        %v1004 = vpop.f32.mrf.mxu0
        %v1005 = vadd.f32 %v916, %v1004
        %1006 = vmatmul.bf16.gmra.mxu0 %v660
        %v1007 = vpop.f32.mrf.mxu0
        %v1008 = vadd.f32 %v919, %v1007
        %v1009 = vpop.f32.mrf.mxu0
        %v1010 = vadd.f32 %v921, %v1009
        %1011 = vmatmul.bf16.gmra.mxu0 %v663
        %v1012 = vpop.f32.mrf.mxu0
        %v1013 = vadd.f32 %v924, %v1012
        %v1014 = vpop.f32.mrf.mxu0
        %v1015 = vadd.f32 %v926, %v1014
        %1016 = vmatmul.bf16.gmra.mxu0 %v666
        %v1017 = vpop.f32.mrf.mxu0
        %v1018 = vadd.f32 %v929, %v1017
        %v1019 = vpop.f32.mrf.mxu0
        %v1020 = vadd.f32 %v931, %v1019
        %1021 = vmatmul.bf16.gmra.mxu0 %v669
        %v1022 = vpop.f32.mrf.mxu0
        %v1023 = vadd.f32 %v934, %v1022
        %v1024 = vpop.f32.mrf.mxu0
        %v1025 = vadd.f32 %v936, %v1024
        %1026 = vmatmul.bf16.gmra.mxu0 %v672
        %v1027 = vpop.f32.mrf.mxu0
        %v1028 = vadd.f32 %v939, %v1027
        %v1029 = vpop.f32.mrf.mxu0
        %v1030 = vadd.f32 %v941, %v1029
        %1031 = vmatmul.bf16.gmra.mxu0 %v675
        %v1032 = vpop.f32.mrf.mxu0
        %v1033 = vadd.f32 %v944, %v1032
        %v1034 = vpop.f32.mrf.mxu0
        %v1035 = vadd.f32 %v946, %v1034
        %1036 = vmatmul.bf16.gmra.mxu0 %v678
        %v1037 = vpop.f32.mrf.mxu0
        %v1038 = vadd.f32 %v949, %v1037
        %v1039 = vpop.f32.mrf.mxu0
        %v1040 = vadd.f32 %v951, %v1039
        %1041 = vmatmul.bf16.gmra.mxu0 %v681
        %v1042 = vpop.f32.mrf.mxu0
        %v1043 = vadd.f32 %v954, %v1042
        %v1044 = vpop.f32.mrf.mxu0
        %v1045 = vadd.f32 %v956, %v1044
        %1046 = vmatmul.bf16.gmra.mxu0 %v684
        %v1047 = vpop.f32.mrf.mxu0
        %v1048 = vadd.f32 %v959, %v1047
        %v1049 = vpop.f32.mrf.mxu0
        %v1050 = vadd.f32 %v961, %v1049
        %1051 = vmatmul.bf16.gmra.mxu0 %v687
        %v1052 = vpop.f32.mrf.mxu0
        %v1053 = vadd.f32 %v964, %v1052
        %v1054 = vpop.f32.mrf.mxu0
        %v1055 = vadd.f32 %v966, %v1054
        %1056 = vmatmul.bf16.gmra.mxu0 %v690
        %v1057 = vpop.f32.mrf.mxu0
        %v1058 = vadd.f32 %v969, %v1057
        %v1059 = vpop.f32.mrf.mxu0
        %v1060 = vadd.f32 %v971, %v1059
        %1061 = vdwg.mxu0
        %1062 = vmatpush.bf16.msra.mxu0 %v859
        %1063 = vmatpush.bf16.msra.mxu0 %v858
        %1064 = vmatpush.bf16.msra.mxu0 %v857
        %1065 = vmatpush.bf16.msra.mxu0 %v856
        %1066 = vmatpush.bf16.msra.mxu0 %v855
        %1067 = vmatpush.bf16.msra.mxu0 %v854
        %1068 = vmatpush.bf16.msra.mxu0 %v853
        %1069 = vmatpush.bf16.msra.mxu0 %v852
        %1070 = vmatmul.bf16.gmra.mxu0 %v646
        %v1071 = vpop.f32.mrf.mxu0
        %v1072 = vadd.f32 %v983, %v1071
        %v1073 = vpop.f32.mrf.mxu0
        %v1074 = vadd.f32 %v985, %v1073
        %1075 = vmatmul.bf16.gmra.mxu0 %v649
        %v1076 = vpop.f32.mrf.mxu0
        %v1077 = vadd.f32 %v988, %v1076
        %v1078 = vpop.f32.mrf.mxu0
        %v1079 = vadd.f32 %v990, %v1078
        %1080 = vmatmul.bf16.gmra.mxu0 %v652
        %v1081 = vpop.f32.mrf.mxu0
        %v1082 = vadd.f32 %v993, %v1081
        %v1083 = vpop.f32.mrf.mxu0
        %v1084 = vadd.f32 %v995, %v1083
        %1085 = vmatmul.bf16.gmra.mxu0 %v655
        %v1086 = vpop.f32.mrf.mxu0
        %v1087 = vadd.f32 %v998, %v1086
        %v1088 = vpop.f32.mrf.mxu0
        %v1089 = vadd.f32 %v1000, %v1088
        %1090 = vmatmul.bf16.gmra.mxu0 %v658
        %v1091 = vpop.f32.mrf.mxu0
        %v1092 = vadd.f32 %v1003, %v1091
        %v1093 = vpop.f32.mrf.mxu0
        %v1094 = vadd.f32 %v1005, %v1093
        %1095 = vmatmul.bf16.gmra.mxu0 %v661
        %v1096 = vpop.f32.mrf.mxu0
        %v1097 = vadd.f32 %v1008, %v1096
        %v1098 = vpop.f32.mrf.mxu0
        %v1099 = vadd.f32 %v1010, %v1098
        %1100 = vmatmul.bf16.gmra.mxu0 %v664
        %v1101 = vpop.f32.mrf.mxu0
        %v1102 = vadd.f32 %v1013, %v1101
        %v1103 = vpop.f32.mrf.mxu0
        %v1104 = vadd.f32 %v1015, %v1103
        %1105 = vmatmul.bf16.gmra.mxu0 %v667
        %v1106 = vpop.f32.mrf.mxu0
        %v1107 = vadd.f32 %v1018, %v1106
        %v1108 = vpop.f32.mrf.mxu0
        %v1109 = vadd.f32 %v1020, %v1108
        %1110 = vmatmul.bf16.gmra.mxu0 %v670
        %v1111 = vpop.f32.mrf.mxu0
        %v1112 = vadd.f32 %v1023, %v1111
        %v1113 = vpop.f32.mrf.mxu0
        %v1114 = vadd.f32 %v1025, %v1113
        %1115 = vmatmul.bf16.gmra.mxu0 %v673
        %v1116 = vpop.f32.mrf.mxu0
        %v1117 = vadd.f32 %v1028, %v1116
        %v1118 = vpop.f32.mrf.mxu0
        %v1119 = vadd.f32 %v1030, %v1118
        %1120 = vmatmul.bf16.gmra.mxu0 %v676
        %v1121 = vpop.f32.mrf.mxu0
        %v1122 = vadd.f32 %v1033, %v1121
        %v1123 = vpop.f32.mrf.mxu0
        %v1124 = vadd.f32 %v1035, %v1123
        %1125 = vmatmul.bf16.gmra.mxu0 %v679
        %v1126 = vpop.f32.mrf.mxu0
        %v1127 = vadd.f32 %v1038, %v1126
        %v1128 = vpop.f32.mrf.mxu0
        %v1129 = vadd.f32 %v1040, %v1128
        %1130 = vmatmul.bf16.gmra.mxu0 %v682
        %v1131 = vpop.f32.mrf.mxu0
        %v1132 = vadd.f32 %v1043, %v1131
        %v1133 = vpop.f32.mrf.mxu0
        %v1134 = vadd.f32 %v1045, %v1133
        %1135 = vmatmul.bf16.gmra.mxu0 %v685
        %v1136 = vpop.f32.mrf.mxu0
        %v1137 = vadd.f32 %v1048, %v1136
        %v1138 = vpop.f32.mrf.mxu0
        %v1139 = vadd.f32 %v1050, %v1138
        %1140 = vmatmul.bf16.gmra.mxu0 %v688
        %v1141 = vpop.f32.mrf.mxu0
        %v1142 = vadd.f32 %v1053, %v1141
        %v1143 = vpop.f32.mrf.mxu0
        %v1144 = vadd.f32 %v1055, %v1143
        %1145 = vmatmul.bf16.gmra.mxu0 %v691
        %v1146 = vpop.f32.mrf.mxu0
        %v1147 = vadd.f32 %v1058, %v1146
        %v1148 = vpop.f32.mrf.mxu0
        %v1149 = vadd.f32 %v1060, %v1148
        %1150 = vdwg.mxu0
        %v1151 = vadd.f32 %v340, %v1072
        %v1152 = vadd.f32 %v341, %v1074
        %v1153 = vadd.f32 %v342, %v1077
        %v1154 = vadd.f32 %v343, %v1079
        %v1155 = vadd.f32 %v344, %v1082
        %v1156 = vadd.f32 %v345, %v1084
        %v1157 = vadd.f32 %v346, %v1087
        %v1158 = vadd.f32 %v347, %v1089
        %v1159 = vadd.f32 %v348, %v1092
        %v1160 = vadd.f32 %v349, %v1094
        %v1161 = vadd.f32 %v350, %v1097
        %v1162 = vadd.f32 %v351, %v1099
        %v1163 = vadd.f32 %v352, %v1102
        %v1164 = vadd.f32 %v353, %v1104
        %v1165 = vadd.f32 %v354, %v1107
        %v1166 = vadd.f32 %v355, %v1109
        %v1167 = vadd.f32 %v356, %v1112
        %v1168 = vadd.f32 %v357, %v1114
        %v1169 = vadd.f32 %v358, %v1117
        %v1170 = vadd.f32 %v359, %v1119
        %v1171 = vadd.f32 %v360, %v1122
        %v1172 = vadd.f32 %v361, %v1124
        %v1173 = vadd.f32 %v362, %v1127
        %v1174 = vadd.f32 %v363, %v1129
        %v1175 = vadd.f32 %v364, %v1132
        %v1176 = vadd.f32 %v365, %v1134
        %v1177 = vadd.f32 %v366, %v1137
        %v1178 = vadd.f32 %v367, %v1139
        %v1179 = vadd.f32 %v368, %v1142
        %v1180 = vadd.f32 %v369, %v1144
        %v1181 = vadd.f32 %v370, %v1147
        %v1182 = vadd.f32 %v371, %v1149
        %1183 = vst [vmem:[#allocation2] sm:$0xff] %v1151
        %1184 = vst [vmem:[#allocation2 + $0x8] sm:$0xff] %v1152
        %1185 = vst [vmem:[#allocation2 + $0x10] sm:$0xff] %v1153
        %1186 = vst [vmem:[#allocation2 + $0x18] sm:$0xff] %v1154
        %1187 = vst [vmem:[#allocation2 + $0x20] sm:$0xff] %v1155
        %1188 = vst [vmem:[#allocation2 + $0x28] sm:$0xff] %v1156
        %1189 = vst [vmem:[#allocation2 + $0x30] sm:$0xff] %v1157
        %1190 = vst [vmem:[#allocation2 + $0x38] sm:$0xff] %v1158
        %1191 = vst [vmem:[#allocation2 + $0x40] sm:$0xff] %v1159
        %1192 = vst [vmem:[#allocation2 + $0x48] sm:$0xff] %v1160
        %1193 = vst [vmem:[#allocation2 + $0x50] sm:$0xff] %v1161
        %1194 = vst [vmem:[#allocation2 + $0x58] sm:$0xff] %v1162
        %1195 = vst [vmem:[#allocation2 + $0x60] sm:$0xff] %v1163
        %1196 = vst [vmem:[#allocation2 + $0x68] sm:$0xff] %v1164
        %1197 = vst [vmem:[#allocation2 + $0x70] sm:$0xff] %v1165
        %1198 = vst [vmem:[#allocation2 + $0x78] sm:$0xff] %v1166
        %1199 = vst [vmem:[#allocation2 + $0x80] sm:$0xff] %v1167
        %1200 = vst [vmem:[#allocation2 + $0x88] sm:$0xff] %v1168
        %1201 = vst [vmem:[#allocation2 + $0x90] sm:$0xff] %v1169
        %1202 = vst [vmem:[#allocation2 + $0x98] sm:$0xff] %v1170
        %1203 = vst [vmem:[#allocation2 + $0xa0] sm:$0xff] %v1171
        %1204 = vst [vmem:[#allocation2 + $0xa8] sm:$0xff] %v1172
        %1205 = vst [vmem:[#allocation2 + $0xb0] sm:$0xff] %v1173
        %1206 = vst [vmem:[#allocation2 + $0xb8] sm:$0xff] %v1174
        %1207 = vst [vmem:[#allocation2 + $0xc0] sm:$0xff] %v1175
        %1208 = vst [vmem:[#allocation2 + $0xc8] sm:$0xff] %v1176
        %1209 = vst [vmem:[#allocation2 + $0xd0] sm:$0xff] %v1177
        %1210 = vst [vmem:[#allocation2 + $0xd8] sm:$0xff] %v1178
        %1211 = vst [vmem:[#allocation2 + $0xe0] sm:$0xff] %v1179
        %1212 = vst [vmem:[#allocation2 + $0xe8] sm:$0xff] %v1180
        %1213 = vst [vmem:[#allocation2 + $0xf0] sm:$0xff] %v1181
        %1214 = vst [vmem:[#allocation2 + $0xf8] sm:$0xff] %v1182
        // Predicated region
        $region49: #{_padded_matmul.1} parent=35 // pred_check
          %p1215 = pneg %p304
        $region50: #{_padded_matmul.1} parent=35 // pred_check_branch
          %1217 = sbr.rel (%p1215) target = $region52
        $region51: #{_padded_matmul.1} parent=35 // pred_region
          %v1218 = vld [vmem:[#allocation2] sm:$0xff]
          %v1219 = vld [vmem:[#allocation2 + $0x8] sm:$0xff]
          %v1220 = vld [vmem:[#allocation2 + $0x10] sm:$0xff]
          %v1221 = vld [vmem:[#allocation2 + $0x18] sm:$0xff]
          %v1222 = vld [vmem:[#allocation2 + $0x20] sm:$0xff]
          %v1223 = vld [vmem:[#allocation2 + $0x28] sm:$0xff]
          %v1224 = vld [vmem:[#allocation2 + $0x30] sm:$0xff]
          %v1225 = vld [vmem:[#allocation2 + $0x38] sm:$0xff]
          %v1226 = vld [vmem:[#allocation2 + $0x40] sm:$0xff]
          %v1227 = vld [vmem:[#allocation2 + $0x48] sm:$0xff]
          %v1228 = vld [vmem:[#allocation2 + $0x50] sm:$0xff]
          %v1229 = vld [vmem:[#allocation2 + $0x58] sm:$0xff]
          %v1230 = vld [vmem:[#allocation2 + $0x60] sm:$0xff]
          %v1231 = vld [vmem:[#allocation2 + $0x68] sm:$0xff]
          %v1232 = vld [vmem:[#allocation2 + $0x70] sm:$0xff]
          %v1233 = vld [vmem:[#allocation2 + $0x78] sm:$0xff]
          %v1234 = vld [vmem:[#allocation2 + $0x80] sm:$0xff]
          %v1235 = vld [vmem:[#allocation2 + $0x88] sm:$0xff]
          %v1236 = vld [vmem:[#allocation2 + $0x90] sm:$0xff]
          %v1237 = vld [vmem:[#allocation2 + $0x98] sm:$0xff]
          %v1238 = vld [vmem:[#allocation2 + $0xa0] sm:$0xff]
          %v1239 = vld [vmem:[#allocation2 + $0xa8] sm:$0xff]
          %v1240 = vld [vmem:[#allocation2 + $0xb0] sm:$0xff]
          %v1241 = vld [vmem:[#allocation2 + $0xb8] sm:$0xff]
          %v1242 = vld [vmem:[#allocation2 + $0xc0] sm:$0xff]
          %v1243 = vld [vmem:[#allocation2 + $0xc8] sm:$0xff]
          %v1244 = vld [vmem:[#allocation2 + $0xd0] sm:$0xff]
          %v1245 = vld [vmem:[#allocation2 + $0xd8] sm:$0xff]
          %v1246 = vld [vmem:[#allocation2 + $0xe0] sm:$0xff]
          %v1247 = vld [vmem:[#allocation2 + $0xe8] sm:$0xff]
          %v1248 = vld [vmem:[#allocation2 + $0xf0] sm:$0xff]
          %v1249 = vld [vmem:[#allocation2 + $0xf8] sm:$0xff]
          %v1250 = vld [vmem:[%s299] sm:$0x1]
          %v1251 = vld [vmem:[%s302] sm:$0x1]
          %v1253 = vperm.slane %v1250, 0
          %v1255 = vmul.f32 %v1218, %v1253
          %v1256 = vmul.f32 %v1219, %v1253
          %v1257 = vmul.f32 %v1220, %v1253
          %v1258 = vmul.f32 %v1221, %v1253
          %v1259 = vmul.f32 %v1222, %v1253
          %v1260 = vmul.f32 %v1223, %v1253
          %v1261 = vmul.f32 %v1224, %v1253
          %v1262 = vmul.f32 %v1225, %v1253
          %v1263 = vmul.f32 %v1226, %v1253
          %v1264 = vmul.f32 %v1227, %v1253
          %v1265 = vmul.f32 %v1228, %v1253
          %v1266 = vmul.f32 %v1229, %v1253
          %v1267 = vmul.f32 %v1230, %v1253
          %v1268 = vmul.f32 %v1231, %v1253
          %v1269 = vmul.f32 %v1232, %v1253
          %v1270 = vmul.f32 %v1233, %v1253
          %v1271 = vmul.f32 %v1234, %v1253
          %v1272 = vmul.f32 %v1235, %v1253
          %v1273 = vmul.f32 %v1236, %v1253
          %v1274 = vmul.f32 %v1237, %v1253
          %v1275 = vmul.f32 %v1238, %v1253
          %v1276 = vmul.f32 %v1239, %v1253
          %v1277 = vmul.f32 %v1240, %v1253
          %v1278 = vmul.f32 %v1241, %v1253
          %v1279 = vmul.f32 %v1242, %v1253
          %v1280 = vmul.f32 %v1243, %v1253
          %v1281 = vmul.f32 %v1244, %v1253
          %v1282 = vmul.f32 %v1245, %v1253
          %v1283 = vmul.f32 %v1246, %v1253
          %v1284 = vmul.f32 %v1247, %v1253
          %v1285 = vmul.f32 %v1248, %v1253
          %v1286 = vmul.f32 %v1249, %v1253
          %v1288 = vperm.slane %v1251, 0
          %v1290 = vadd.f32 %v1255, %v1288
          %v1291 = vadd.f32 %v1256, %v1288
          %v1292 = vadd.f32 %v1257, %v1288
          %v1293 = vadd.f32 %v1258, %v1288
          %v1294 = vadd.f32 %v1259, %v1288
          %v1295 = vadd.f32 %v1260, %v1288
          %v1296 = vadd.f32 %v1261, %v1288
          %v1297 = vadd.f32 %v1262, %v1288
          %v1298 = vadd.f32 %v1263, %v1288
          %v1299 = vadd.f32 %v1264, %v1288
          %v1300 = vadd.f32 %v1265, %v1288
          %v1301 = vadd.f32 %v1266, %v1288
          %v1302 = vadd.f32 %v1267, %v1288
          %v1303 = vadd.f32 %v1268, %v1288
          %v1304 = vadd.f32 %v1269, %v1288
          %v1305 = vadd.f32 %v1270, %v1288
          %v1306 = vadd.f32 %v1271, %v1288
          %v1307 = vadd.f32 %v1272, %v1288
          %v1308 = vadd.f32 %v1273, %v1288
          %v1309 = vadd.f32 %v1274, %v1288
          %v1310 = vadd.f32 %v1275, %v1288
          %v1311 = vadd.f32 %v1276, %v1288
          %v1312 = vadd.f32 %v1277, %v1288
          %v1313 = vadd.f32 %v1278, %v1288
          %v1314 = vadd.f32 %v1279, %v1288
          %v1315 = vadd.f32 %v1280, %v1288
          %v1316 = vadd.f32 %v1281, %v1288
          %v1317 = vadd.f32 %v1282, %v1288
          %v1318 = vadd.f32 %v1283, %v1288
          %v1319 = vadd.f32 %v1284, %v1288
          %v1320 = vadd.f32 %v1285, %v1288
          %v1321 = vadd.f32 %v1286, %v1288
          %v1322 = vmul.f32 %v1290, 0.5
          %v1323 = vmul.f32 %v1291, 0.5
          %v1324 = vmul.f32 %v1292, 0.5
          %v1325 = vmul.f32 %v1293, 0.5
          %v1326 = vmul.f32 %v1294, 0.5
          %v1327 = vmul.f32 %v1295, 0.5
          %v1328 = vmul.f32 %v1296, 0.5
          %v1329 = vmul.f32 %v1297, 0.5
          %v1330 = vmul.f32 %v1298, 0.5
          %v1331 = vmul.f32 %v1299, 0.5
          %v1332 = vmul.f32 %v1300, 0.5
          %v1333 = vmul.f32 %v1301, 0.5
          %v1334 = vmul.f32 %v1302, 0.5
          %v1335 = vmul.f32 %v1303, 0.5
          %v1336 = vmul.f32 %v1304, 0.5
          %v1337 = vmul.f32 %v1305, 0.5
          %v1338 = vmul.f32 %v1306, 0.5
          %v1339 = vmul.f32 %v1307, 0.5
          %v1340 = vmul.f32 %v1308, 0.5
          %v1341 = vmul.f32 %v1309, 0.5
          %v1342 = vmul.f32 %v1310, 0.5
          %v1343 = vmul.f32 %v1311, 0.5
          %v1344 = vmul.f32 %v1312, 0.5
          %v1345 = vmul.f32 %v1313, 0.5
          %v1346 = vmul.f32 %v1314, 0.5
          %v1347 = vmul.f32 %v1315, 0.5
          %v1348 = vmul.f32 %v1316, 0.5
          %v1349 = vmul.f32 %v1317, 0.5
          %v1350 = vmul.f32 %v1318, 0.5
          %v1351 = vmul.f32 %v1319, 0.5
          %v1352 = vmul.f32 %v1320, 0.5
          %v1353 = vmul.f32 %v1321, 0.5
          %v1354 = vmul.f32 %v1290, 0.70710677
          %v1355 = vmul.f32 %v1291, 0.70710677
          %v1356 = vmul.f32 %v1292, 0.70710677
          %v1357 = vmul.f32 %v1293, 0.70710677
          %v1358 = vmul.f32 %v1294, 0.70710677
          %v1359 = vmul.f32 %v1295, 0.70710677
          %v1360 = vmul.f32 %v1296, 0.70710677
          %v1361 = vmul.f32 %v1297, 0.70710677
          %v1362 = vmul.f32 %v1298, 0.70710677
          %v1363 = vmul.f32 %v1299, 0.70710677
          %v1364 = vmul.f32 %v1300, 0.70710677
          %v1365 = vmul.f32 %v1301, 0.70710677
          %v1366 = vmul.f32 %v1302, 0.70710677
          %v1367 = vmul.f32 %v1303, 0.70710677
          %v1368 = vmul.f32 %v1304, 0.70710677
          %v1369 = vmul.f32 %v1305, 0.70710677
          %v1370 = vmul.f32 %v1306, 0.70710677
          %v1371 = vmul.f32 %v1307, 0.70710677
          %v1372 = vmul.f32 %v1308, 0.70710677
          %v1373 = vmul.f32 %v1309, 0.70710677
          %v1374 = vmul.f32 %v1310, 0.70710677
          %v1375 = vmul.f32 %v1311, 0.70710677
          %v1376 = vmul.f32 %v1312, 0.70710677
          %v1377 = vmul.f32 %v1313, 0.70710677
          %v1378 = vmul.f32 %v1314, 0.70710677
          %v1379 = vmul.f32 %v1315, 0.70710677
          %v1380 = vmul.f32 %v1316, 0.70710677
          %v1381 = vmul.f32 %v1317, 0.70710677
          %v1382 = vmul.f32 %v1318, 0.70710677
          %v1383 = vmul.f32 %v1319, 0.70710677
          %v1384 = vmul.f32 %v1320, 0.70710677
          %v1385 = vmul.f32 %v1321, 0.70710677
          %vm1386 = vcmp.lt.f32.partialorder %v1354, 0.0
          %vm1387 = vcmp.lt.f32.partialorder %v1355, 0.0
          %vm1388 = vcmp.lt.f32.partialorder %v1356, 0.0
          %vm1389 = vcmp.lt.f32.partialorder %v1357, 0.0
          %vm1390 = vcmp.lt.f32.partialorder %v1358, 0.0
          %vm1391 = vcmp.lt.f32.partialorder %v1359, 0.0
          %vm1392 = vcmp.lt.f32.partialorder %v1360, 0.0
          %vm1393 = vcmp.lt.f32.partialorder %v1361, 0.0
          %vm1394 = vcmp.lt.f32.partialorder %v1362, 0.0
          %vm1395 = vcmp.lt.f32.partialorder %v1363, 0.0
          %vm1396 = vcmp.lt.f32.partialorder %v1364, 0.0
          %vm1397 = vcmp.lt.f32.partialorder %v1365, 0.0
          %vm1398 = vcmp.lt.f32.partialorder %v1366, 0.0
          %vm1399 = vcmp.lt.f32.partialorder %v1367, 0.0
          %vm1400 = vcmp.lt.f32.partialorder %v1368, 0.0
          %vm1401 = vcmp.lt.f32.partialorder %v1369, 0.0
          %vm1402 = vcmp.lt.f32.partialorder %v1370, 0.0
          %vm1403 = vcmp.lt.f32.partialorder %v1371, 0.0
          %vm1404 = vcmp.lt.f32.partialorder %v1372, 0.0
          %vm1405 = vcmp.lt.f32.partialorder %v1373, 0.0
          %vm1406 = vcmp.lt.f32.partialorder %v1374, 0.0
          %vm1407 = vcmp.lt.f32.partialorder %v1375, 0.0
          %vm1408 = vcmp.lt.f32.partialorder %v1376, 0.0
          %vm1409 = vcmp.lt.f32.partialorder %v1377, 0.0
          %vm1410 = vcmp.lt.f32.partialorder %v1378, 0.0
          %vm1411 = vcmp.lt.f32.partialorder %v1379, 0.0
          %vm1412 = vcmp.lt.f32.partialorder %v1380, 0.0
          %vm1413 = vcmp.lt.f32.partialorder %v1381, 0.0
          %vm1414 = vcmp.lt.f32.partialorder %v1382, 0.0
          %vm1415 = vcmp.lt.f32.partialorder %v1383, 0.0
          %vm1416 = vcmp.lt.f32.partialorder %v1384, 0.0
          %vm1417 = vcmp.lt.f32.partialorder %v1385, 0.0
          %v1418 = vsel %vm1386, -1.0, 1.0
          %v1419 = vsel %vm1387, -1.0, 1.0
          %v1420 = vsel %vm1388, -1.0, 1.0
          %v1421 = vsel %vm1389, -1.0, 1.0
          %v1422 = vsel %vm1390, -1.0, 1.0
          %v1423 = vsel %vm1391, -1.0, 1.0
          %v1424 = vsel %vm1392, -1.0, 1.0
          %v1425 = vsel %vm1393, -1.0, 1.0
          %v1426 = vsel %vm1394, -1.0, 1.0
          %v1427 = vsel %vm1395, -1.0, 1.0
          %v1428 = vsel %vm1396, -1.0, 1.0
          %v1429 = vsel %vm1397, -1.0, 1.0
          %v1430 = vsel %vm1398, -1.0, 1.0
          %v1431 = vsel %vm1399, -1.0, 1.0
          %v1432 = vsel %vm1400, -1.0, 1.0
          %v1433 = vsel %vm1401, -1.0, 1.0
          %v1434 = vsel %vm1402, -1.0, 1.0
          %v1435 = vsel %vm1403, -1.0, 1.0
          %v1436 = vsel %vm1404, -1.0, 1.0
          %v1437 = vsel %vm1405, -1.0, 1.0
          %v1438 = vsel %vm1406, -1.0, 1.0
          %v1439 = vsel %vm1407, -1.0, 1.0
          %v1440 = vsel %vm1408, -1.0, 1.0
          %v1441 = vsel %vm1409, -1.0, 1.0
          %v1442 = vsel %vm1410, -1.0, 1.0
          %v1443 = vsel %vm1411, -1.0, 1.0
          %v1444 = vsel %vm1412, -1.0, 1.0
          %v1445 = vsel %vm1413, -1.0, 1.0
          %v1446 = vsel %vm1414, -1.0, 1.0
          %v1447 = vsel %vm1415, -1.0, 1.0
          %v1448 = vsel %vm1416, -1.0, 1.0
          %v1449 = vsel %vm1417, -1.0, 1.0
          %v1450 = vand.u32 2147483647, %v1354
          %v1451 = vand.u32 2147483647, %v1355
          %v1452 = vand.u32 2147483647, %v1356
          %v1453 = vand.u32 2147483647, %v1357
          %v1454 = vand.u32 2147483647, %v1358
          %v1455 = vand.u32 2147483647, %v1359
          %v1456 = vand.u32 2147483647, %v1360
          %v1457 = vand.u32 2147483647, %v1361
          %v1458 = vand.u32 2147483647, %v1362
          %v1459 = vand.u32 2147483647, %v1363
          %v1460 = vand.u32 2147483647, %v1364
          %v1461 = vand.u32 2147483647, %v1365
          %v1462 = vand.u32 2147483647, %v1366
          %v1463 = vand.u32 2147483647, %v1367
          %v1464 = vand.u32 2147483647, %v1368
          %v1465 = vand.u32 2147483647, %v1369
          %v1466 = vand.u32 2147483647, %v1370
          %v1467 = vand.u32 2147483647, %v1371
          %v1468 = vand.u32 2147483647, %v1372
          %v1469 = vand.u32 2147483647, %v1373
          %v1470 = vand.u32 2147483647, %v1374
          %v1471 = vand.u32 2147483647, %v1375
          %v1472 = vand.u32 2147483647, %v1376
          %v1473 = vand.u32 2147483647, %v1377
          %v1474 = vand.u32 2147483647, %v1378
          %v1475 = vand.u32 2147483647, %v1379
          %v1476 = vand.u32 2147483647, %v1380
          %v1477 = vand.u32 2147483647, %v1381
          %v1478 = vand.u32 2147483647, %v1382
          %v1479 = vand.u32 2147483647, %v1383
          %v1480 = vand.u32 2147483647, %v1384
          %v1481 = vand.u32 2147483647, %v1385
          %v1482 = vmul.f32 %v1450, 0.3275911
          %v1483 = vmul.f32 %v1451, 0.3275911
          %v1484 = vmul.f32 %v1452, 0.3275911
          %v1485 = vmul.f32 %v1453, 0.3275911
          %v1486 = vmul.f32 %v1454, 0.3275911
          %v1487 = vmul.f32 %v1455, 0.3275911
          %v1488 = vmul.f32 %v1456, 0.3275911
          %v1489 = vmul.f32 %v1457, 0.3275911
          %v1490 = vmul.f32 %v1458, 0.3275911
          %v1491 = vmul.f32 %v1459, 0.3275911
          %v1492 = vmul.f32 %v1460, 0.3275911
          %v1493 = vmul.f32 %v1461, 0.3275911
          %v1494 = vmul.f32 %v1462, 0.3275911
          %v1495 = vmul.f32 %v1463, 0.3275911
          %v1496 = vmul.f32 %v1464, 0.3275911
          %v1497 = vmul.f32 %v1465, 0.3275911
          %v1498 = vmul.f32 %v1466, 0.3275911
          %v1499 = vmul.f32 %v1467, 0.3275911
          %v1500 = vmul.f32 %v1468, 0.3275911
          %v1501 = vmul.f32 %v1469, 0.3275911
          %v1502 = vmul.f32 %v1470, 0.3275911
          %v1503 = vmul.f32 %v1471, 0.3275911
          %v1504 = vmul.f32 %v1472, 0.3275911
          %v1505 = vmul.f32 %v1473, 0.3275911
          %v1506 = vmul.f32 %v1474, 0.3275911
          %v1507 = vmul.f32 %v1475, 0.3275911
          %v1508 = vmul.f32 %v1476, 0.3275911
          %v1509 = vmul.f32 %v1477, 0.3275911
          %v1510 = vmul.f32 %v1478, 0.3275911
          %v1511 = vmul.f32 %v1479, 0.3275911
          %v1512 = vmul.f32 %v1480, 0.3275911
          %v1513 = vmul.f32 %v1481, 0.3275911
          %v1514 = vadd.f32 %v1482, 1.0
          %v1515 = vadd.f32 %v1483, 1.0
          %v1516 = vadd.f32 %v1484, 1.0
          %v1517 = vadd.f32 %v1485, 1.0
          %v1518 = vadd.f32 %v1486, 1.0
          %v1519 = vadd.f32 %v1487, 1.0
          %v1520 = vadd.f32 %v1488, 1.0
          %v1521 = vadd.f32 %v1489, 1.0
          %v1522 = vadd.f32 %v1490, 1.0
          %v1523 = vadd.f32 %v1491, 1.0
          %v1524 = vadd.f32 %v1492, 1.0
          %v1525 = vadd.f32 %v1493, 1.0
          %v1526 = vadd.f32 %v1494, 1.0
          %v1527 = vadd.f32 %v1495, 1.0
          %v1528 = vadd.f32 %v1496, 1.0
          %v1529 = vadd.f32 %v1497, 1.0
          %v1530 = vadd.f32 %v1498, 1.0
          %v1531 = vadd.f32 %v1499, 1.0
          %v1532 = vadd.f32 %v1500, 1.0
          %v1533 = vadd.f32 %v1501, 1.0
          %v1534 = vadd.f32 %v1502, 1.0
          %v1535 = vadd.f32 %v1503, 1.0
          %v1536 = vadd.f32 %v1504, 1.0
          %v1537 = vadd.f32 %v1505, 1.0
          %v1538 = vadd.f32 %v1506, 1.0
          %v1539 = vadd.f32 %v1507, 1.0
          %v1540 = vadd.f32 %v1508, 1.0
          %v1541 = vadd.f32 %v1509, 1.0
          %v1542 = vadd.f32 %v1510, 1.0
          %v1543 = vadd.f32 %v1511, 1.0
          %v1544 = vadd.f32 %v1512, 1.0
          %v1545 = vadd.f32 %v1513, 1.0
          %v1546 = vrcp.pop %v1514
          %v1547 = vmul.f32 %v1514, %v1546
          %v1548 = vsub.f32 1.0, %v1547
          %v1549 = vmul.f32 %v1546, %v1548
          %v1550 = vadd.f32 %v1546, %v1549
          %vm1551 = vweird.f32 %v1514
          %vm1552 = vweird.f32 %v1546
          %vm1553 = vmor %vm1551, %vm1552
          %v1554 = vsel %vm1553, %v1546, %v1550
          %v1555 = vand.u32 2147483647, %v1514
          %vm1556 = vcmp.eq.f32.partialorder %v1555, 8.507059e+37
          %v1557 = vand.u32 %v1514, 2147483648
          %v1558 = vor.u32 1.1754944e-38, %v1557
          %v1559 = vsel %vm1556, %v1558, %v1554
          %v1560 = vmul.f32 1.0, %v1559
          %v1561 = vrcp.pop %v1515
          %v1562 = vmul.f32 %v1515, %v1561
          %v1563 = vsub.f32 1.0, %v1562
          %v1564 = vmul.f32 %v1561, %v1563
          %v1565 = vadd.f32 %v1561, %v1564
          %vm1566 = vweird.f32 %v1515
          %vm1567 = vweird.f32 %v1561
          %vm1568 = vmor %vm1566, %vm1567
          %v1569 = vsel %vm1568, %v1561, %v1565
          %v1570 = vand.u32 2147483647, %v1515
          %vm1571 = vcmp.eq.f32.partialorder %v1570, 8.507059e+37
          %v1572 = vand.u32 %v1515, 2147483648
          %v1573 = vor.u32 1.1754944e-38, %v1572
          %v1574 = vsel %vm1571, %v1573, %v1569
          %v1575 = vmul.f32 1.0, %v1574
          %v1576 = vrcp.pop %v1516
          %v1577 = vmul.f32 %v1516, %v1576
          %v1578 = vsub.f32 1.0, %v1577
          %v1579 = vmul.f32 %v1576, %v1578
          %v1580 = vadd.f32 %v1576, %v1579
          %vm1581 = vweird.f32 %v1516
          %vm1582 = vweird.f32 %v1576
          %vm1583 = vmor %vm1581, %vm1582
          %v1584 = vsel %vm1583, %v1576, %v1580
          %v1585 = vand.u32 2147483647, %v1516
          %vm1586 = vcmp.eq.f32.partialorder %v1585, 8.507059e+37
          %v1587 = vand.u32 %v1516, 2147483648
          %v1588 = vor.u32 1.1754944e-38, %v1587
          %v1589 = vsel %vm1586, %v1588, %v1584
          %v1590 = vmul.f32 1.0, %v1589
          %v1591 = vrcp.pop %v1517
          %v1592 = vmul.f32 %v1517, %v1591
          %v1593 = vsub.f32 1.0, %v1592
          %v1594 = vmul.f32 %v1591, %v1593
          %v1595 = vadd.f32 %v1591, %v1594
          %vm1596 = vweird.f32 %v1517
          %vm1597 = vweird.f32 %v1591
          %vm1598 = vmor %vm1596, %vm1597
          %v1599 = vsel %vm1598, %v1591, %v1595
          %v1600 = vand.u32 2147483647, %v1517
          %vm1601 = vcmp.eq.f32.partialorder %v1600, 8.507059e+37
          %v1602 = vand.u32 %v1517, 2147483648
          %v1603 = vor.u32 1.1754944e-38, %v1602
          %v1604 = vsel %vm1601, %v1603, %v1599
          %v1605 = vmul.f32 1.0, %v1604
          %v1606 = vrcp.pop %v1518
          %v1607 = vmul.f32 %v1518, %v1606
          %v1608 = vsub.f32 1.0, %v1607
          %v1609 = vmul.f32 %v1606, %v1608
          %v1610 = vadd.f32 %v1606, %v1609
          %vm1611 = vweird.f32 %v1518
          %vm1612 = vweird.f32 %v1606
          %vm1613 = vmor %vm1611, %vm1612
          %v1614 = vsel %vm1613, %v1606, %v1610
          %v1615 = vand.u32 2147483647, %v1518
          %vm1616 = vcmp.eq.f32.partialorder %v1615, 8.507059e+37
          %v1617 = vand.u32 %v1518, 2147483648
          %v1618 = vor.u32 1.1754944e-38, %v1617
          %v1619 = vsel %vm1616, %v1618, %v1614
          %v1620 = vmul.f32 1.0, %v1619
          %v1621 = vrcp.pop %v1519
          %v1622 = vmul.f32 %v1519, %v1621
          %v1623 = vsub.f32 1.0, %v1622
          %v1624 = vmul.f32 %v1621, %v1623
          %v1625 = vadd.f32 %v1621, %v1624
          %vm1626 = vweird.f32 %v1519
          %vm1627 = vweird.f32 %v1621
          %vm1628 = vmor %vm1626, %vm1627
          %v1629 = vsel %vm1628, %v1621, %v1625
          %v1630 = vand.u32 2147483647, %v1519
          %vm1631 = vcmp.eq.f32.partialorder %v1630, 8.507059e+37
          %v1632 = vand.u32 %v1519, 2147483648
          %v1633 = vor.u32 1.1754944e-38, %v1632
          %v1634 = vsel %vm1631, %v1633, %v1629
          %v1635 = vmul.f32 1.0, %v1634
          %v1636 = vrcp.pop %v1520
          %v1637 = vmul.f32 %v1520, %v1636
          %v1638 = vsub.f32 1.0, %v1637
          %v1639 = vmul.f32 %v1636, %v1638
          %v1640 = vadd.f32 %v1636, %v1639
          %vm1641 = vweird.f32 %v1520
          %vm1642 = vweird.f32 %v1636
          %vm1643 = vmor %vm1641, %vm1642
          %v1644 = vsel %vm1643, %v1636, %v1640
          %v1645 = vand.u32 2147483647, %v1520
          %vm1646 = vcmp.eq.f32.partialorder %v1645, 8.507059e+37
          %v1647 = vand.u32 %v1520, 2147483648
          %v1648 = vor.u32 1.1754944e-38, %v1647
          %v1649 = vsel %vm1646, %v1648, %v1644
          %v1650 = vmul.f32 1.0, %v1649
          %v1651 = vrcp.pop %v1521
          %v1652 = vmul.f32 %v1521, %v1651
          %v1653 = vsub.f32 1.0, %v1652
          %v1654 = vmul.f32 %v1651, %v1653
          %v1655 = vadd.f32 %v1651, %v1654
          %vm1656 = vweird.f32 %v1521
          %vm1657 = vweird.f32 %v1651
          %vm1658 = vmor %vm1656, %vm1657
          %v1659 = vsel %vm1658, %v1651, %v1655
          %v1660 = vand.u32 2147483647, %v1521
          %vm1661 = vcmp.eq.f32.partialorder %v1660, 8.507059e+37
          %v1662 = vand.u32 %v1521, 2147483648
          %v1663 = vor.u32 1.1754944e-38, %v1662
          %v1664 = vsel %vm1661, %v1663, %v1659
          %v1665 = vmul.f32 1.0, %v1664
          %v1666 = vrcp.pop %v1522
          %v1667 = vmul.f32 %v1522, %v1666
          %v1668 = vsub.f32 1.0, %v1667
          %v1669 = vmul.f32 %v1666, %v1668
          %v1670 = vadd.f32 %v1666, %v1669
          %vm1671 = vweird.f32 %v1522
          %vm1672 = vweird.f32 %v1666
          %vm1673 = vmor %vm1671, %vm1672
          %v1674 = vsel %vm1673, %v1666, %v1670
          %v1675 = vand.u32 2147483647, %v1522
          %vm1676 = vcmp.eq.f32.partialorder %v1675, 8.507059e+37
          %v1677 = vand.u32 %v1522, 2147483648
          %v1678 = vor.u32 1.1754944e-38, %v1677
          %v1679 = vsel %vm1676, %v1678, %v1674
          %v1680 = vmul.f32 1.0, %v1679
          %v1681 = vrcp.pop %v1523
          %v1682 = vmul.f32 %v1523, %v1681
          %v1683 = vsub.f32 1.0, %v1682
          %v1684 = vmul.f32 %v1681, %v1683
          %v1685 = vadd.f32 %v1681, %v1684
          %vm1686 = vweird.f32 %v1523
          %vm1687 = vweird.f32 %v1681
          %vm1688 = vmor %vm1686, %vm1687
          %v1689 = vsel %vm1688, %v1681, %v1685
          %v1690 = vand.u32 2147483647, %v1523
          %vm1691 = vcmp.eq.f32.partialorder %v1690, 8.507059e+37
          %v1692 = vand.u32 %v1523, 2147483648
          %v1693 = vor.u32 1.1754944e-38, %v1692
          %v1694 = vsel %vm1691, %v1693, %v1689
          %v1695 = vmul.f32 1.0, %v1694
          %v1696 = vrcp.pop %v1524
          %v1697 = vmul.f32 %v1524, %v1696
          %v1698 = vsub.f32 1.0, %v1697
          %v1699 = vmul.f32 %v1696, %v1698
          %v1700 = vadd.f32 %v1696, %v1699
          %vm1701 = vweird.f32 %v1524
          %vm1702 = vweird.f32 %v1696
          %vm1703 = vmor %vm1701, %vm1702
          %v1704 = vsel %vm1703, %v1696, %v1700
          %v1705 = vand.u32 2147483647, %v1524
          %vm1706 = vcmp.eq.f32.partialorder %v1705, 8.507059e+37
          %v1707 = vand.u32 %v1524, 2147483648
          %v1708 = vor.u32 1.1754944e-38, %v1707
          %v1709 = vsel %vm1706, %v1708, %v1704
          %v1710 = vmul.f32 1.0, %v1709
          %v1711 = vrcp.pop %v1525
          %v1712 = vmul.f32 %v1525, %v1711
          %v1713 = vsub.f32 1.0, %v1712
          %v1714 = vmul.f32 %v1711, %v1713
          %v1715 = vadd.f32 %v1711, %v1714
          %vm1716 = vweird.f32 %v1525
          %vm1717 = vweird.f32 %v1711
          %vm1718 = vmor %vm1716, %vm1717
          %v1719 = vsel %vm1718, %v1711, %v1715
          %v1720 = vand.u32 2147483647, %v1525
          %vm1721 = vcmp.eq.f32.partialorder %v1720, 8.507059e+37
          %v1722 = vand.u32 %v1525, 2147483648
          %v1723 = vor.u32 1.1754944e-38, %v1722
          %v1724 = vsel %vm1721, %v1723, %v1719
          %v1725 = vmul.f32 1.0, %v1724
          %v1726 = vrcp.pop %v1526
          %v1727 = vmul.f32 %v1526, %v1726
          %v1728 = vsub.f32 1.0, %v1727
          %v1729 = vmul.f32 %v1726, %v1728
          %v1730 = vadd.f32 %v1726, %v1729
          %vm1731 = vweird.f32 %v1526
          %vm1732 = vweird.f32 %v1726
          %vm1733 = vmor %vm1731, %vm1732
          %v1734 = vsel %vm1733, %v1726, %v1730
          %v1735 = vand.u32 2147483647, %v1526
          %vm1736 = vcmp.eq.f32.partialorder %v1735, 8.507059e+37
          %v1737 = vand.u32 %v1526, 2147483648
          %v1738 = vor.u32 1.1754944e-38, %v1737
          %v1739 = vsel %vm1736, %v1738, %v1734
          %v1740 = vmul.f32 1.0, %v1739
          %v1741 = vrcp.pop %v1527
          %v1742 = vmul.f32 %v1527, %v1741
          %v1743 = vsub.f32 1.0, %v1742
          %v1744 = vmul.f32 %v1741, %v1743
          %v1745 = vadd.f32 %v1741, %v1744
          %vm1746 = vweird.f32 %v1527
          %vm1747 = vweird.f32 %v1741
          %vm1748 = vmor %vm1746, %vm1747
          %v1749 = vsel %vm1748, %v1741, %v1745
          %v1750 = vand.u32 2147483647, %v1527
          %vm1751 = vcmp.eq.f32.partialorder %v1750, 8.507059e+37
          %v1752 = vand.u32 %v1527, 2147483648
          %v1753 = vor.u32 1.1754944e-38, %v1752
          %v1754 = vsel %vm1751, %v1753, %v1749
          %v1755 = vmul.f32 1.0, %v1754
          %v1756 = vrcp.pop %v1528
          %v1757 = vmul.f32 %v1528, %v1756
          %v1758 = vsub.f32 1.0, %v1757
          %v1759 = vmul.f32 %v1756, %v1758
          %v1760 = vadd.f32 %v1756, %v1759
          %vm1761 = vweird.f32 %v1528
          %vm1762 = vweird.f32 %v1756
          %vm1763 = vmor %vm1761, %vm1762
          %v1764 = vsel %vm1763, %v1756, %v1760
          %v1765 = vand.u32 2147483647, %v1528
          %vm1766 = vcmp.eq.f32.partialorder %v1765, 8.507059e+37
          %v1767 = vand.u32 %v1528, 2147483648
          %v1768 = vor.u32 1.1754944e-38, %v1767
          %v1769 = vsel %vm1766, %v1768, %v1764
          %v1770 = vmul.f32 1.0, %v1769
          %v1771 = vrcp.pop %v1529
          %v1772 = vmul.f32 %v1529, %v1771
          %v1773 = vsub.f32 1.0, %v1772
          %v1774 = vmul.f32 %v1771, %v1773
          %v1775 = vadd.f32 %v1771, %v1774
          %vm1776 = vweird.f32 %v1529
          %vm1777 = vweird.f32 %v1771
          %vm1778 = vmor %vm1776, %vm1777
          %v1779 = vsel %vm1778, %v1771, %v1775
          %v1780 = vand.u32 2147483647, %v1529
          %vm1781 = vcmp.eq.f32.partialorder %v1780, 8.507059e+37
          %v1782 = vand.u32 %v1529, 2147483648
          %v1783 = vor.u32 1.1754944e-38, %v1782
          %v1784 = vsel %vm1781, %v1783, %v1779
          %v1785 = vmul.f32 1.0, %v1784
          %v1786 = vrcp.pop %v1530
          %v1787 = vmul.f32 %v1530, %v1786
          %v1788 = vsub.f32 1.0, %v1787
          %v1789 = vmul.f32 %v1786, %v1788
          %v1790 = vadd.f32 %v1786, %v1789
          %vm1791 = vweird.f32 %v1530
          %vm1792 = vweird.f32 %v1786
          %vm1793 = vmor %vm1791, %vm1792
          %v1794 = vsel %vm1793, %v1786, %v1790
          %v1795 = vand.u32 2147483647, %v1530
          %vm1796 = vcmp.eq.f32.partialorder %v1795, 8.507059e+37
          %v1797 = vand.u32 %v1530, 2147483648
          %v1798 = vor.u32 1.1754944e-38, %v1797
          %v1799 = vsel %vm1796, %v1798, %v1794
          %v1800 = vmul.f32 1.0, %v1799
          %v1801 = vrcp.pop %v1531
          %v1802 = vmul.f32 %v1531, %v1801
          %v1803 = vsub.f32 1.0, %v1802
          %v1804 = vmul.f32 %v1801, %v1803
          %v1805 = vadd.f32 %v1801, %v1804
          %vm1806 = vweird.f32 %v1531
          %vm1807 = vweird.f32 %v1801
          %vm1808 = vmor %vm1806, %vm1807
          %v1809 = vsel %vm1808, %v1801, %v1805
          %v1810 = vand.u32 2147483647, %v1531
          %vm1811 = vcmp.eq.f32.partialorder %v1810, 8.507059e+37
          %v1812 = vand.u32 %v1531, 2147483648
          %v1813 = vor.u32 1.1754944e-38, %v1812
          %v1814 = vsel %vm1811, %v1813, %v1809
          %v1815 = vmul.f32 1.0, %v1814
          %v1816 = vrcp.pop %v1532
          %v1817 = vmul.f32 %v1532, %v1816
          %v1818 = vsub.f32 1.0, %v1817
          %v1819 = vmul.f32 %v1816, %v1818
          %v1820 = vadd.f32 %v1816, %v1819
          %vm1821 = vweird.f32 %v1532
          %vm1822 = vweird.f32 %v1816
          %vm1823 = vmor %vm1821, %vm1822
          %v1824 = vsel %vm1823, %v1816, %v1820
          %v1825 = vand.u32 2147483647, %v1532
          %vm1826 = vcmp.eq.f32.partialorder %v1825, 8.507059e+37
          %v1827 = vand.u32 %v1532, 2147483648
          %v1828 = vor.u32 1.1754944e-38, %v1827
          %v1829 = vsel %vm1826, %v1828, %v1824
          %v1830 = vmul.f32 1.0, %v1829
          %v1831 = vrcp.pop %v1533
          %v1832 = vmul.f32 %v1533, %v1831
          %v1833 = vsub.f32 1.0, %v1832
          %v1834 = vmul.f32 %v1831, %v1833
          %v1835 = vadd.f32 %v1831, %v1834
          %vm1836 = vweird.f32 %v1533
          %vm1837 = vweird.f32 %v1831
          %vm1838 = vmor %vm1836, %vm1837
          %v1839 = vsel %vm1838, %v1831, %v1835
          %v1840 = vand.u32 2147483647, %v1533
          %vm1841 = vcmp.eq.f32.partialorder %v1840, 8.507059e+37
          %v1842 = vand.u32 %v1533, 2147483648
          %v1843 = vor.u32 1.1754944e-38, %v1842
          %v1844 = vsel %vm1841, %v1843, %v1839
          %v1845 = vmul.f32 1.0, %v1844
          %v1846 = vrcp.pop %v1534
          %v1847 = vmul.f32 %v1534, %v1846
          %v1848 = vsub.f32 1.0, %v1847
          %v1849 = vmul.f32 %v1846, %v1848
          %v1850 = vadd.f32 %v1846, %v1849
          %vm1851 = vweird.f32 %v1534
          %vm1852 = vweird.f32 %v1846
          %vm1853 = vmor %vm1851, %vm1852
          %v1854 = vsel %vm1853, %v1846, %v1850
          %v1855 = vand.u32 2147483647, %v1534
          %vm1856 = vcmp.eq.f32.partialorder %v1855, 8.507059e+37
          %v1857 = vand.u32 %v1534, 2147483648
          %v1858 = vor.u32 1.1754944e-38, %v1857
          %v1859 = vsel %vm1856, %v1858, %v1854
          %v1860 = vmul.f32 1.0, %v1859
          %v1861 = vrcp.pop %v1535
          %v1862 = vmul.f32 %v1535, %v1861
          %v1863 = vsub.f32 1.0, %v1862
          %v1864 = vmul.f32 %v1861, %v1863
          %v1865 = vadd.f32 %v1861, %v1864
          %vm1866 = vweird.f32 %v1535
          %vm1867 = vweird.f32 %v1861
          %vm1868 = vmor %vm1866, %vm1867
          %v1869 = vsel %vm1868, %v1861, %v1865
          %v1870 = vand.u32 2147483647, %v1535
          %vm1871 = vcmp.eq.f32.partialorder %v1870, 8.507059e+37
          %v1872 = vand.u32 %v1535, 2147483648
          %v1873 = vor.u32 1.1754944e-38, %v1872
          %v1874 = vsel %vm1871, %v1873, %v1869
          %v1875 = vmul.f32 1.0, %v1874
          %v1876 = vrcp.pop %v1536
          %v1877 = vmul.f32 %v1536, %v1876
          %v1878 = vsub.f32 1.0, %v1877
          %v1879 = vmul.f32 %v1876, %v1878
          %v1880 = vadd.f32 %v1876, %v1879
          %vm1881 = vweird.f32 %v1536
          %vm1882 = vweird.f32 %v1876
          %vm1883 = vmor %vm1881, %vm1882
          %v1884 = vsel %vm1883, %v1876, %v1880
          %v1885 = vand.u32 2147483647, %v1536
          %vm1886 = vcmp.eq.f32.partialorder %v1885, 8.507059e+37
          %v1887 = vand.u32 %v1536, 2147483648
          %v1888 = vor.u32 1.1754944e-38, %v1887
          %v1889 = vsel %vm1886, %v1888, %v1884
          %v1890 = vmul.f32 1.0, %v1889
          %v1891 = vrcp.pop %v1537
          %v1892 = vmul.f32 %v1537, %v1891
          %v1893 = vsub.f32 1.0, %v1892
          %v1894 = vmul.f32 %v1891, %v1893
          %v1895 = vadd.f32 %v1891, %v1894
          %vm1896 = vweird.f32 %v1537
          %vm1897 = vweird.f32 %v1891
          %vm1898 = vmor %vm1896, %vm1897
          %v1899 = vsel %vm1898, %v1891, %v1895
          %v1900 = vand.u32 2147483647, %v1537
          %vm1901 = vcmp.eq.f32.partialorder %v1900, 8.507059e+37
          %v1902 = vand.u32 %v1537, 2147483648
          %v1903 = vor.u32 1.1754944e-38, %v1902
          %v1904 = vsel %vm1901, %v1903, %v1899
          %v1905 = vmul.f32 1.0, %v1904
          %v1906 = vrcp.pop %v1538
          %v1907 = vmul.f32 %v1538, %v1906
          %v1908 = vsub.f32 1.0, %v1907
          %v1909 = vmul.f32 %v1906, %v1908
          %v1910 = vadd.f32 %v1906, %v1909
          %vm1911 = vweird.f32 %v1538
          %vm1912 = vweird.f32 %v1906
          %vm1913 = vmor %vm1911, %vm1912
          %v1914 = vsel %vm1913, %v1906, %v1910
          %v1915 = vand.u32 2147483647, %v1538
          %vm1916 = vcmp.eq.f32.partialorder %v1915, 8.507059e+37
          %v1917 = vand.u32 %v1538, 2147483648
          %v1918 = vor.u32 1.1754944e-38, %v1917
          %v1919 = vsel %vm1916, %v1918, %v1914
          %v1920 = vmul.f32 1.0, %v1919
          %v1921 = vrcp.pop %v1539
          %v1922 = vmul.f32 %v1539, %v1921
          %v1923 = vsub.f32 1.0, %v1922
          %v1924 = vmul.f32 %v1921, %v1923
          %v1925 = vadd.f32 %v1921, %v1924
          %vm1926 = vweird.f32 %v1539
          %vm1927 = vweird.f32 %v1921
          %vm1928 = vmor %vm1926, %vm1927
          %v1929 = vsel %vm1928, %v1921, %v1925
          %v1930 = vand.u32 2147483647, %v1539
          %vm1931 = vcmp.eq.f32.partialorder %v1930, 8.507059e+37
          %v1932 = vand.u32 %v1539, 2147483648
          %v1933 = vor.u32 1.1754944e-38, %v1932
          %v1934 = vsel %vm1931, %v1933, %v1929
          %v1935 = vmul.f32 1.0, %v1934
          %v1936 = vrcp.pop %v1540
          %v1937 = vmul.f32 %v1540, %v1936
          %v1938 = vsub.f32 1.0, %v1937
          %v1939 = vmul.f32 %v1936, %v1938
          %v1940 = vadd.f32 %v1936, %v1939
          %vm1941 = vweird.f32 %v1540
          %vm1942 = vweird.f32 %v1936
          %vm1943 = vmor %vm1941, %vm1942
          %v1944 = vsel %vm1943, %v1936, %v1940
          %v1945 = vand.u32 2147483647, %v1540
          %vm1946 = vcmp.eq.f32.partialorder %v1945, 8.507059e+37
          %v1947 = vand.u32 %v1540, 2147483648
          %v1948 = vor.u32 1.1754944e-38, %v1947
          %v1949 = vsel %vm1946, %v1948, %v1944
          %v1950 = vmul.f32 1.0, %v1949
          %v1951 = vrcp.pop %v1541
          %v1952 = vmul.f32 %v1541, %v1951
          %v1953 = vsub.f32 1.0, %v1952
          %v1954 = vmul.f32 %v1951, %v1953
          %v1955 = vadd.f32 %v1951, %v1954
          %vm1956 = vweird.f32 %v1541
          %vm1957 = vweird.f32 %v1951
          %vm1958 = vmor %vm1956, %vm1957
          %v1959 = vsel %vm1958, %v1951, %v1955
          %v1960 = vand.u32 2147483647, %v1541
          %vm1961 = vcmp.eq.f32.partialorder %v1960, 8.507059e+37
          %v1962 = vand.u32 %v1541, 2147483648
          %v1963 = vor.u32 1.1754944e-38, %v1962
          %v1964 = vsel %vm1961, %v1963, %v1959
          %v1965 = vmul.f32 1.0, %v1964
          %v1966 = vrcp.pop %v1542
          %v1967 = vmul.f32 %v1542, %v1966
          %v1968 = vsub.f32 1.0, %v1967
          %v1969 = vmul.f32 %v1966, %v1968
          %v1970 = vadd.f32 %v1966, %v1969
          %vm1971 = vweird.f32 %v1542
          %vm1972 = vweird.f32 %v1966
          %vm1973 = vmor %vm1971, %vm1972
          %v1974 = vsel %vm1973, %v1966, %v1970
          %v1975 = vand.u32 2147483647, %v1542
          %vm1976 = vcmp.eq.f32.partialorder %v1975, 8.507059e+37
          %v1977 = vand.u32 %v1542, 2147483648
          %v1978 = vor.u32 1.1754944e-38, %v1977
          %v1979 = vsel %vm1976, %v1978, %v1974
          %v1980 = vmul.f32 1.0, %v1979
          %v1981 = vrcp.pop %v1543
          %v1982 = vmul.f32 %v1543, %v1981
          %v1983 = vsub.f32 1.0, %v1982
          %v1984 = vmul.f32 %v1981, %v1983
          %v1985 = vadd.f32 %v1981, %v1984
          %vm1986 = vweird.f32 %v1543
          %vm1987 = vweird.f32 %v1981
          %vm1988 = vmor %vm1986, %vm1987
          %v1989 = vsel %vm1988, %v1981, %v1985
          %v1990 = vand.u32 2147483647, %v1543
          %vm1991 = vcmp.eq.f32.partialorder %v1990, 8.507059e+37
          %v1992 = vand.u32 %v1543, 2147483648
          %v1993 = vor.u32 1.1754944e-38, %v1992
          %v1994 = vsel %vm1991, %v1993, %v1989
          %v1995 = vmul.f32 1.0, %v1994
          %v1996 = vrcp.pop %v1544
          %v1997 = vmul.f32 %v1544, %v1996
          %v1998 = vsub.f32 1.0, %v1997
          %v1999 = vmul.f32 %v1996, %v1998
          %v2000 = vadd.f32 %v1996, %v1999
          %vm2001 = vweird.f32 %v1544
          %vm2002 = vweird.f32 %v1996
          %vm2003 = vmor %vm2001, %vm2002
          %v2004 = vsel %vm2003, %v1996, %v2000
          %v2005 = vand.u32 2147483647, %v1544
          %vm2006 = vcmp.eq.f32.partialorder %v2005, 8.507059e+37
          %v2007 = vand.u32 %v1544, 2147483648
          %v2008 = vor.u32 1.1754944e-38, %v2007
          %v2009 = vsel %vm2006, %v2008, %v2004
          %v2010 = vmul.f32 1.0, %v2009
          %v2011 = vrcp.pop %v1545
          %v2012 = vmul.f32 %v1545, %v2011
          %v2013 = vsub.f32 1.0, %v2012
          %v2014 = vmul.f32 %v2011, %v2013
          %v2015 = vadd.f32 %v2011, %v2014
          %vm2016 = vweird.f32 %v1545
          %vm2017 = vweird.f32 %v2011
          %vm2018 = vmor %vm2016, %vm2017
          %v2019 = vsel %vm2018, %v2011, %v2015
          %v2020 = vand.u32 2147483647, %v1545
          %vm2021 = vcmp.eq.f32.partialorder %v2020, 8.507059e+37
          %v2022 = vand.u32 %v1545, 2147483648
          %v2023 = vor.u32 1.1754944e-38, %v2022
          %v2024 = vsel %vm2021, %v2023, %v2019
          %v2025 = vmul.f32 1.0, %v2024
          %v2026 = vmul.f32 %v1560, 1.0614054
          %v2027 = vmul.f32 %v1575, 1.0614054
          %v2028 = vmul.f32 %v1590, 1.0614054
          %v2029 = vmul.f32 %v1605, 1.0614054
          %v2030 = vmul.f32 %v1620, 1.0614054
          %v2031 = vmul.f32 %v1635, 1.0614054
          %v2032 = vmul.f32 %v1650, 1.0614054
          %v2033 = vmul.f32 %v1665, 1.0614054
          %v2034 = vmul.f32 %v1680, 1.0614054
          %v2035 = vmul.f32 %v1695, 1.0614054
          %v2036 = vmul.f32 %v1710, 1.0614054
          %v2037 = vmul.f32 %v1725, 1.0614054
          %v2038 = vmul.f32 %v1740, 1.0614054
          %v2039 = vmul.f32 %v1755, 1.0614054
          %v2040 = vmul.f32 %v1770, 1.0614054
          %v2041 = vmul.f32 %v1785, 1.0614054
          %v2042 = vmul.f32 %v1800, 1.0614054
          %v2043 = vmul.f32 %v1815, 1.0614054
          %v2044 = vmul.f32 %v1830, 1.0614054
          %v2045 = vmul.f32 %v1845, 1.0614054
          %v2046 = vmul.f32 %v1860, 1.0614054
          %v2047 = vmul.f32 %v1875, 1.0614054
          %v2048 = vmul.f32 %v1890, 1.0614054
          %v2049 = vmul.f32 %v1905, 1.0614054
          %v2050 = vmul.f32 %v1920, 1.0614054
          %v2051 = vmul.f32 %v1935, 1.0614054
          %v2052 = vmul.f32 %v1950, 1.0614054
          %v2053 = vmul.f32 %v1965, 1.0614054
          %v2054 = vmul.f32 %v1980, 1.0614054
          %v2055 = vmul.f32 %v1995, 1.0614054
          %v2056 = vmul.f32 %v2010, 1.0614054
          %v2057 = vmul.f32 %v2025, 1.0614054
          %v2058 = vadd.f32 %v2026, -1.4531521
          %v2059 = vadd.f32 %v2027, -1.4531521
          %v2060 = vadd.f32 %v2028, -1.4531521
          %v2061 = vadd.f32 %v2029, -1.4531521
          %v2062 = vadd.f32 %v2030, -1.4531521
          %v2063 = vadd.f32 %v2031, -1.4531521
          %v2064 = vadd.f32 %v2032, -1.4531521
          %v2065 = vadd.f32 %v2033, -1.4531521
          %v2066 = vadd.f32 %v2034, -1.4531521
          %v2067 = vadd.f32 %v2035, -1.4531521
          %v2068 = vadd.f32 %v2036, -1.4531521
          %v2069 = vadd.f32 %v2037, -1.4531521
          %v2070 = vadd.f32 %v2038, -1.4531521
          %v2071 = vadd.f32 %v2039, -1.4531521
          %v2072 = vadd.f32 %v2040, -1.4531521
          %v2073 = vadd.f32 %v2041, -1.4531521
          %v2074 = vadd.f32 %v2042, -1.4531521
          %v2075 = vadd.f32 %v2043, -1.4531521
          %v2076 = vadd.f32 %v2044, -1.4531521
          %v2077 = vadd.f32 %v2045, -1.4531521
          %v2078 = vadd.f32 %v2046, -1.4531521
          %v2079 = vadd.f32 %v2047, -1.4531521
          %v2080 = vadd.f32 %v2048, -1.4531521
          %v2081 = vadd.f32 %v2049, -1.4531521
          %v2082 = vadd.f32 %v2050, -1.4531521
          %v2083 = vadd.f32 %v2051, -1.4531521
          %v2084 = vadd.f32 %v2052, -1.4531521
          %v2085 = vadd.f32 %v2053, -1.4531521
          %v2086 = vadd.f32 %v2054, -1.4531521
          %v2087 = vadd.f32 %v2055, -1.4531521
          %v2088 = vadd.f32 %v2056, -1.4531521
          %v2089 = vadd.f32 %v2057, -1.4531521
          %v2090 = vmul.f32 %v1560, %v2058
          %v2091 = vmul.f32 %v1575, %v2059
          %v2092 = vmul.f32 %v1590, %v2060
          %v2093 = vmul.f32 %v1605, %v2061
          %v2094 = vmul.f32 %v1620, %v2062
          %v2095 = vmul.f32 %v1635, %v2063
          %v2096 = vmul.f32 %v1650, %v2064
          %v2097 = vmul.f32 %v1665, %v2065
          %v2098 = vmul.f32 %v1680, %v2066
          %v2099 = vmul.f32 %v1695, %v2067
          %v2100 = vmul.f32 %v1710, %v2068
          %v2101 = vmul.f32 %v1725, %v2069
          %v2102 = vmul.f32 %v1740, %v2070
          %v2103 = vmul.f32 %v1755, %v2071
          %v2104 = vmul.f32 %v1770, %v2072
          %v2105 = vmul.f32 %v1785, %v2073
          %v2106 = vmul.f32 %v1800, %v2074
          %v2107 = vmul.f32 %v1815, %v2075
          %v2108 = vmul.f32 %v1830, %v2076
          %v2109 = vmul.f32 %v1845, %v2077
          %v2110 = vmul.f32 %v1860, %v2078
          %v2111 = vmul.f32 %v1875, %v2079
          %v2112 = vmul.f32 %v1890, %v2080
          %v2113 = vmul.f32 %v1905, %v2081
          %v2114 = vmul.f32 %v1920, %v2082
          %v2115 = vmul.f32 %v1935, %v2083
          %v2116 = vmul.f32 %v1950, %v2084
          %v2117 = vmul.f32 %v1965, %v2085
          %v2118 = vmul.f32 %v1980, %v2086
          %v2119 = vmul.f32 %v1995, %v2087
          %v2120 = vmul.f32 %v2010, %v2088
          %v2121 = vmul.f32 %v2025, %v2089
          %v2122 = vadd.f32 %v2090, 1.4214138
          %v2123 = vadd.f32 %v2091, 1.4214138
          %v2124 = vadd.f32 %v2092, 1.4214138
          %v2125 = vadd.f32 %v2093, 1.4214138
          %v2126 = vadd.f32 %v2094, 1.4214138
          %v2127 = vadd.f32 %v2095, 1.4214138
          %v2128 = vadd.f32 %v2096, 1.4214138
          %v2129 = vadd.f32 %v2097, 1.4214138
          %v2130 = vadd.f32 %v2098, 1.4214138
          %v2131 = vadd.f32 %v2099, 1.4214138
          %v2132 = vadd.f32 %v2100, 1.4214138
          %v2133 = vadd.f32 %v2101, 1.4214138
          %v2134 = vadd.f32 %v2102, 1.4214138
          %v2135 = vadd.f32 %v2103, 1.4214138
          %v2136 = vadd.f32 %v2104, 1.4214138
          %v2137 = vadd.f32 %v2105, 1.4214138
          %v2138 = vadd.f32 %v2106, 1.4214138
          %v2139 = vadd.f32 %v2107, 1.4214138
          %v2140 = vadd.f32 %v2108, 1.4214138
          %v2141 = vadd.f32 %v2109, 1.4214138
          %v2142 = vadd.f32 %v2110, 1.4214138
          %v2143 = vadd.f32 %v2111, 1.4214138
          %v2144 = vadd.f32 %v2112, 1.4214138
          %v2145 = vadd.f32 %v2113, 1.4214138
          %v2146 = vadd.f32 %v2114, 1.4214138
          %v2147 = vadd.f32 %v2115, 1.4214138
          %v2148 = vadd.f32 %v2116, 1.4214138
          %v2149 = vadd.f32 %v2117, 1.4214138
          %v2150 = vadd.f32 %v2118, 1.4214138
          %v2151 = vadd.f32 %v2119, 1.4214138
          %v2152 = vadd.f32 %v2120, 1.4214138
          %v2153 = vadd.f32 %v2121, 1.4214138
          %v2154 = vmul.f32 %v1560, %v2122
          %v2155 = vmul.f32 %v1575, %v2123
          %v2156 = vmul.f32 %v1590, %v2124
          %v2157 = vmul.f32 %v1605, %v2125
          %v2158 = vmul.f32 %v1620, %v2126
          %v2159 = vmul.f32 %v1635, %v2127
          %v2160 = vmul.f32 %v1650, %v2128
          %v2161 = vmul.f32 %v1665, %v2129
          %v2162 = vmul.f32 %v1680, %v2130
          %v2163 = vmul.f32 %v1695, %v2131
          %v2164 = vmul.f32 %v1710, %v2132
          %v2165 = vmul.f32 %v1725, %v2133
          %v2166 = vmul.f32 %v1740, %v2134
          %v2167 = vmul.f32 %v1755, %v2135
          %v2168 = vmul.f32 %v1770, %v2136
          %v2169 = vmul.f32 %v1785, %v2137
          %v2170 = vmul.f32 %v1800, %v2138
          %v2171 = vmul.f32 %v1815, %v2139
          %v2172 = vmul.f32 %v1830, %v2140
          %v2173 = vmul.f32 %v1845, %v2141
          %v2174 = vmul.f32 %v1860, %v2142
          %v2175 = vmul.f32 %v1875, %v2143
          %v2176 = vmul.f32 %v1890, %v2144
          %v2177 = vmul.f32 %v1905, %v2145
          %v2178 = vmul.f32 %v1920, %v2146
          %v2179 = vmul.f32 %v1935, %v2147
          %v2180 = vmul.f32 %v1950, %v2148
          %v2181 = vmul.f32 %v1965, %v2149
          %v2182 = vmul.f32 %v1980, %v2150
          %v2183 = vmul.f32 %v1995, %v2151
          %v2184 = vmul.f32 %v2010, %v2152
          %v2185 = vmul.f32 %v2025, %v2153
          %v2186 = vadd.f32 %v2154, -0.28449672
          %v2187 = vadd.f32 %v2155, -0.28449672
          %v2188 = vadd.f32 %v2156, -0.28449672
          %v2189 = vadd.f32 %v2157, -0.28449672
          %v2190 = vadd.f32 %v2158, -0.28449672
          %v2191 = vadd.f32 %v2159, -0.28449672
          %v2192 = vadd.f32 %v2160, -0.28449672
          %v2193 = vadd.f32 %v2161, -0.28449672
          %v2194 = vadd.f32 %v2162, -0.28449672
          %v2195 = vadd.f32 %v2163, -0.28449672
          %v2196 = vadd.f32 %v2164, -0.28449672
          %v2197 = vadd.f32 %v2165, -0.28449672
          %v2198 = vadd.f32 %v2166, -0.28449672
          %v2199 = vadd.f32 %v2167, -0.28449672
          %v2200 = vadd.f32 %v2168, -0.28449672
          %v2201 = vadd.f32 %v2169, -0.28449672
          %v2202 = vadd.f32 %v2170, -0.28449672
          %v2203 = vadd.f32 %v2171, -0.28449672
          %v2204 = vadd.f32 %v2172, -0.28449672
          %v2205 = vadd.f32 %v2173, -0.28449672
          %v2206 = vadd.f32 %v2174, -0.28449672
          %v2207 = vadd.f32 %v2175, -0.28449672
          %v2208 = vadd.f32 %v2176, -0.28449672
          %v2209 = vadd.f32 %v2177, -0.28449672
          %v2210 = vadd.f32 %v2178, -0.28449672
          %v2211 = vadd.f32 %v2179, -0.28449672
          %v2212 = vadd.f32 %v2180, -0.28449672
          %v2213 = vadd.f32 %v2181, -0.28449672
          %v2214 = vadd.f32 %v2182, -0.28449672
          %v2215 = vadd.f32 %v2183, -0.28449672
          %v2216 = vadd.f32 %v2184, -0.28449672
          %v2217 = vadd.f32 %v2185, -0.28449672
          %v2218 = vmul.f32 %v1560, %v2186
          %v2219 = vmul.f32 %v1575, %v2187
          %v2220 = vmul.f32 %v1590, %v2188
          %v2221 = vmul.f32 %v1605, %v2189
          %v2222 = vmul.f32 %v1620, %v2190
          %v2223 = vmul.f32 %v1635, %v2191
          %v2224 = vmul.f32 %v1650, %v2192
          %v2225 = vmul.f32 %v1665, %v2193
          %v2226 = vmul.f32 %v1680, %v2194
          %v2227 = vmul.f32 %v1695, %v2195
          %v2228 = vmul.f32 %v1710, %v2196
          %v2229 = vmul.f32 %v1725, %v2197
          %v2230 = vmul.f32 %v1740, %v2198
          %v2231 = vmul.f32 %v1755, %v2199
          %v2232 = vmul.f32 %v1770, %v2200
          %v2233 = vmul.f32 %v1785, %v2201
          %v2234 = vmul.f32 %v1800, %v2202
          %v2235 = vmul.f32 %v1815, %v2203
          %v2236 = vmul.f32 %v1830, %v2204
          %v2237 = vmul.f32 %v1845, %v2205
          %v2238 = vmul.f32 %v1860, %v2206
          %v2239 = vmul.f32 %v1875, %v2207
          %v2240 = vmul.f32 %v1890, %v2208
          %v2241 = vmul.f32 %v1905, %v2209
          %v2242 = vmul.f32 %v1920, %v2210
          %v2243 = vmul.f32 %v1935, %v2211
          %v2244 = vmul.f32 %v1950, %v2212
          %v2245 = vmul.f32 %v1965, %v2213
          %v2246 = vmul.f32 %v1980, %v2214
          %v2247 = vmul.f32 %v1995, %v2215
          %v2248 = vmul.f32 %v2010, %v2216
          %v2249 = vmul.f32 %v2025, %v2217
          %v2250 = vadd.f32 %v2218, 0.2548296
          %v2251 = vadd.f32 %v2219, 0.2548296
          %v2252 = vadd.f32 %v2220, 0.2548296
          %v2253 = vadd.f32 %v2221, 0.2548296
          %v2254 = vadd.f32 %v2222, 0.2548296
          %v2255 = vadd.f32 %v2223, 0.2548296
          %v2256 = vadd.f32 %v2224, 0.2548296
          %v2257 = vadd.f32 %v2225, 0.2548296
          %v2258 = vadd.f32 %v2226, 0.2548296
          %v2259 = vadd.f32 %v2227, 0.2548296
          %v2260 = vadd.f32 %v2228, 0.2548296
          %v2261 = vadd.f32 %v2229, 0.2548296
          %v2262 = vadd.f32 %v2230, 0.2548296
          %v2263 = vadd.f32 %v2231, 0.2548296
          %v2264 = vadd.f32 %v2232, 0.2548296
          %v2265 = vadd.f32 %v2233, 0.2548296
          %v2266 = vadd.f32 %v2234, 0.2548296
          %v2267 = vadd.f32 %v2235, 0.2548296
          %v2268 = vadd.f32 %v2236, 0.2548296
          %v2269 = vadd.f32 %v2237, 0.2548296
          %v2270 = vadd.f32 %v2238, 0.2548296
          %v2271 = vadd.f32 %v2239, 0.2548296
          %v2272 = vadd.f32 %v2240, 0.2548296
          %v2273 = vadd.f32 %v2241, 0.2548296
          %v2274 = vadd.f32 %v2242, 0.2548296
          %v2275 = vadd.f32 %v2243, 0.2548296
          %v2276 = vadd.f32 %v2244, 0.2548296
          %v2277 = vadd.f32 %v2245, 0.2548296
          %v2278 = vadd.f32 %v2246, 0.2548296
          %v2279 = vadd.f32 %v2247, 0.2548296
          %v2280 = vadd.f32 %v2248, 0.2548296
          %v2281 = vadd.f32 %v2249, 0.2548296
          %v2282 = vmul.f32 %v1560, %v2250
          %v2283 = vmul.f32 %v1575, %v2251
          %v2284 = vmul.f32 %v1590, %v2252
          %v2285 = vmul.f32 %v1605, %v2253
          %v2286 = vmul.f32 %v1620, %v2254
          %v2287 = vmul.f32 %v1635, %v2255
          %v2288 = vmul.f32 %v1650, %v2256
          %v2289 = vmul.f32 %v1665, %v2257
          %v2290 = vmul.f32 %v1680, %v2258
          %v2291 = vmul.f32 %v1695, %v2259
          %v2292 = vmul.f32 %v1710, %v2260
          %v2293 = vmul.f32 %v1725, %v2261
          %v2294 = vmul.f32 %v1740, %v2262
          %v2295 = vmul.f32 %v1755, %v2263
          %v2296 = vmul.f32 %v1770, %v2264
          %v2297 = vmul.f32 %v1785, %v2265
          %v2298 = vmul.f32 %v1800, %v2266
          %v2299 = vmul.f32 %v1815, %v2267
          %v2300 = vmul.f32 %v1830, %v2268
          %v2301 = vmul.f32 %v1845, %v2269
          %v2302 = vmul.f32 %v1860, %v2270
          %v2303 = vmul.f32 %v1875, %v2271
          %v2304 = vmul.f32 %v1890, %v2272
          %v2305 = vmul.f32 %v1905, %v2273
          %v2306 = vmul.f32 %v1920, %v2274
          %v2307 = vmul.f32 %v1935, %v2275
          %v2308 = vmul.f32 %v1950, %v2276
          %v2309 = vmul.f32 %v1965, %v2277
          %v2310 = vmul.f32 %v1980, %v2278
          %v2311 = vmul.f32 %v1995, %v2279
          %v2312 = vmul.f32 %v2010, %v2280
          %v2313 = vmul.f32 %v2025, %v2281
          %v2314 = vsub.f32 0.0, %v1450
          %v2315 = vsub.f32 0.0, %v1451
          %v2316 = vsub.f32 0.0, %v1452
          %v2317 = vsub.f32 0.0, %v1453
          %v2318 = vsub.f32 0.0, %v1454
          %v2319 = vsub.f32 0.0, %v1455
          %v2320 = vsub.f32 0.0, %v1456
          %v2321 = vsub.f32 0.0, %v1457
          %v2322 = vsub.f32 0.0, %v1458
          %v2323 = vsub.f32 0.0, %v1459
          %v2324 = vsub.f32 0.0, %v1460
          %v2325 = vsub.f32 0.0, %v1461
          %v2326 = vsub.f32 0.0, %v1462
          %v2327 = vsub.f32 0.0, %v1463
          %v2328 = vsub.f32 0.0, %v1464
          %v2329 = vsub.f32 0.0, %v1465
          %v2330 = vsub.f32 0.0, %v1466
          %v2331 = vsub.f32 0.0, %v1467
          %v2332 = vsub.f32 0.0, %v1468
          %v2333 = vsub.f32 0.0, %v1469
          %v2334 = vsub.f32 0.0, %v1470
          %v2335 = vsub.f32 0.0, %v1471
          %v2336 = vsub.f32 0.0, %v1472
          %v2337 = vsub.f32 0.0, %v1473
          %v2338 = vsub.f32 0.0, %v1474
          %v2339 = vsub.f32 0.0, %v1475
          %v2340 = vsub.f32 0.0, %v1476
          %v2341 = vsub.f32 0.0, %v1477
          %v2342 = vsub.f32 0.0, %v1478
          %v2343 = vsub.f32 0.0, %v1479
          %v2344 = vsub.f32 0.0, %v1480
          %v2345 = vsub.f32 0.0, %v1481
          %v2346 = vmul.f32 %v2314, %v1450
          %v2347 = vmul.f32 %v2315, %v1451
          %v2348 = vmul.f32 %v2316, %v1452
          %v2349 = vmul.f32 %v2317, %v1453
          %v2350 = vmul.f32 %v2318, %v1454
          %v2351 = vmul.f32 %v2319, %v1455
          %v2352 = vmul.f32 %v2320, %v1456
          %v2353 = vmul.f32 %v2321, %v1457
          %v2354 = vmul.f32 %v2322, %v1458
          %v2355 = vmul.f32 %v2323, %v1459
          %v2356 = vmul.f32 %v2324, %v1460
          %v2357 = vmul.f32 %v2325, %v1461
          %v2358 = vmul.f32 %v2326, %v1462
          %v2359 = vmul.f32 %v2327, %v1463
          %v2360 = vmul.f32 %v2328, %v1464
          %v2361 = vmul.f32 %v2329, %v1465
          %v2362 = vmul.f32 %v2330, %v1466
          %v2363 = vmul.f32 %v2331, %v1467
          %v2364 = vmul.f32 %v2332, %v1468
          %v2365 = vmul.f32 %v2333, %v1469
          %v2366 = vmul.f32 %v2334, %v1470
          %v2367 = vmul.f32 %v2335, %v1471
          %v2368 = vmul.f32 %v2336, %v1472
          %v2369 = vmul.f32 %v2337, %v1473
          %v2370 = vmul.f32 %v2338, %v1474
          %v2371 = vmul.f32 %v2339, %v1475
          %v2372 = vmul.f32 %v2340, %v1476
          %v2373 = vmul.f32 %v2341, %v1477
          %v2374 = vmul.f32 %v2342, %v1478
          %v2375 = vmul.f32 %v2343, %v1479
          %v2376 = vmul.f32 %v2344, %v1480
          %v2377 = vmul.f32 %v2345, %v1481
          %v2378 = vmul.f32 %v2346, 1.442695
          %v2379 = vpow.pop %v2378
          %v2380 = vmul.f32 %v2347, 1.442695
          %v2381 = vpow.pop %v2380
          %v2382 = vmul.f32 %v2348, 1.442695
          %v2383 = vpow.pop %v2382
          %v2384 = vmul.f32 %v2349, 1.442695
          %v2385 = vpow.pop %v2384
          %v2386 = vmul.f32 %v2350, 1.442695
          %v2387 = vpow.pop %v2386
          %v2388 = vmul.f32 %v2351, 1.442695
          %v2389 = vpow.pop %v2388
          %v2390 = vmul.f32 %v2352, 1.442695
          %v2391 = vpow.pop %v2390
          %v2392 = vmul.f32 %v2353, 1.442695
          %v2393 = vpow.pop %v2392
          %v2394 = vmul.f32 %v2354, 1.442695
          %v2395 = vpow.pop %v2394
          %v2396 = vmul.f32 %v2355, 1.442695
          %v2397 = vpow.pop %v2396
          %v2398 = vmul.f32 %v2356, 1.442695
          %v2399 = vpow.pop %v2398
          %v2400 = vmul.f32 %v2357, 1.442695
          %v2401 = vpow.pop %v2400
          %v2402 = vmul.f32 %v2358, 1.442695
          %v2403 = vpow.pop %v2402
          %v2404 = vmul.f32 %v2359, 1.442695
          %v2405 = vpow.pop %v2404
          %v2406 = vmul.f32 %v2360, 1.442695
          %v2407 = vpow.pop %v2406
          %v2408 = vmul.f32 %v2361, 1.442695
          %v2409 = vpow.pop %v2408
          %v2410 = vmul.f32 %v2362, 1.442695
          %v2411 = vpow.pop %v2410
          %v2412 = vmul.f32 %v2363, 1.442695
          %v2413 = vpow.pop %v2412
          %v2414 = vmul.f32 %v2364, 1.442695
          %v2415 = vpow.pop %v2414
          %v2416 = vmul.f32 %v2365, 1.442695
          %v2417 = vpow.pop %v2416
          %v2418 = vmul.f32 %v2366, 1.442695
          %v2419 = vpow.pop %v2418
          %v2420 = vmul.f32 %v2367, 1.442695
          %v2421 = vpow.pop %v2420
          %v2422 = vmul.f32 %v2368, 1.442695
          %v2423 = vpow.pop %v2422
          %v2424 = vmul.f32 %v2369, 1.442695
          %v2425 = vpow.pop %v2424
          %v2426 = vmul.f32 %v2370, 1.442695
          %v2427 = vpow.pop %v2426
          %v2428 = vmul.f32 %v2371, 1.442695
          %v2429 = vpow.pop %v2428
          %v2430 = vmul.f32 %v2372, 1.442695
          %v2431 = vpow.pop %v2430
          %v2432 = vmul.f32 %v2373, 1.442695
          %v2433 = vpow.pop %v2432
          %v2434 = vmul.f32 %v2374, 1.442695
          %v2435 = vpow.pop %v2434
          %v2436 = vmul.f32 %v2375, 1.442695
          %v2437 = vpow.pop %v2436
          %v2438 = vmul.f32 %v2376, 1.442695
          %v2439 = vpow.pop %v2438
          %v2440 = vmul.f32 %v2377, 1.442695
          %v2441 = vpow.pop %v2440
          %v2442 = vmul.f32 %v2282, %v2379
          %v2443 = vmul.f32 %v2283, %v2381
          %v2444 = vmul.f32 %v2284, %v2383
          %v2445 = vmul.f32 %v2285, %v2385
          %v2446 = vmul.f32 %v2286, %v2387
          %v2447 = vmul.f32 %v2287, %v2389
          %v2448 = vmul.f32 %v2288, %v2391
          %v2449 = vmul.f32 %v2289, %v2393
          %v2450 = vmul.f32 %v2290, %v2395
          %v2451 = vmul.f32 %v2291, %v2397
          %v2452 = vmul.f32 %v2292, %v2399
          %v2453 = vmul.f32 %v2293, %v2401
          %v2454 = vmul.f32 %v2294, %v2403
          %v2455 = vmul.f32 %v2295, %v2405
          %v2456 = vmul.f32 %v2296, %v2407
          %v2457 = vmul.f32 %v2297, %v2409
          %v2458 = vmul.f32 %v2298, %v2411
          %v2459 = vmul.f32 %v2299, %v2413
          %v2460 = vmul.f32 %v2300, %v2415
          %v2461 = vmul.f32 %v2301, %v2417
          %v2462 = vmul.f32 %v2302, %v2419
          %v2463 = vmul.f32 %v2303, %v2421
          %v2464 = vmul.f32 %v2304, %v2423
          %v2465 = vmul.f32 %v2305, %v2425
          %v2466 = vmul.f32 %v2306, %v2427
          %v2467 = vmul.f32 %v2307, %v2429
          %v2468 = vmul.f32 %v2308, %v2431
          %v2469 = vmul.f32 %v2309, %v2433
          %v2470 = vmul.f32 %v2310, %v2435
          %v2471 = vmul.f32 %v2311, %v2437
          %v2472 = vmul.f32 %v2312, %v2439
          %v2473 = vmul.f32 %v2313, %v2441
          %v2474 = vsub.f32 1.0, %v2442
          %v2475 = vsub.f32 1.0, %v2443
          %v2476 = vsub.f32 1.0, %v2444
          %v2477 = vsub.f32 1.0, %v2445
          %v2478 = vsub.f32 1.0, %v2446
          %v2479 = vsub.f32 1.0, %v2447
          %v2480 = vsub.f32 1.0, %v2448
          %v2481 = vsub.f32 1.0, %v2449
          %v2482 = vsub.f32 1.0, %v2450
          %v2483 = vsub.f32 1.0, %v2451
          %v2484 = vsub.f32 1.0, %v2452
          %v2485 = vsub.f32 1.0, %v2453
          %v2486 = vsub.f32 1.0, %v2454
          %v2487 = vsub.f32 1.0, %v2455
          %v2488 = vsub.f32 1.0, %v2456
          %v2489 = vsub.f32 1.0, %v2457
          %v2490 = vsub.f32 1.0, %v2458
          %v2491 = vsub.f32 1.0, %v2459
          %v2492 = vsub.f32 1.0, %v2460
          %v2493 = vsub.f32 1.0, %v2461
          %v2494 = vsub.f32 1.0, %v2462
          %v2495 = vsub.f32 1.0, %v2463
          %v2496 = vsub.f32 1.0, %v2464
          %v2497 = vsub.f32 1.0, %v2465
          %v2498 = vsub.f32 1.0, %v2466
          %v2499 = vsub.f32 1.0, %v2467
          %v2500 = vsub.f32 1.0, %v2468
          %v2501 = vsub.f32 1.0, %v2469
          %v2502 = vsub.f32 1.0, %v2470
          %v2503 = vsub.f32 1.0, %v2471
          %v2504 = vsub.f32 1.0, %v2472
          %v2505 = vsub.f32 1.0, %v2473
          %v2506 = vmul.f32 %v1418, %v2474
          %v2507 = vmul.f32 %v1419, %v2475
          %v2508 = vmul.f32 %v1420, %v2476
          %v2509 = vmul.f32 %v1421, %v2477
          %v2510 = vmul.f32 %v1422, %v2478
          %v2511 = vmul.f32 %v1423, %v2479
          %v2512 = vmul.f32 %v1424, %v2480
          %v2513 = vmul.f32 %v1425, %v2481
          %v2514 = vmul.f32 %v1426, %v2482
          %v2515 = vmul.f32 %v1427, %v2483
          %v2516 = vmul.f32 %v1428, %v2484
          %v2517 = vmul.f32 %v1429, %v2485
          %v2518 = vmul.f32 %v1430, %v2486
          %v2519 = vmul.f32 %v1431, %v2487
          %v2520 = vmul.f32 %v1432, %v2488
          %v2521 = vmul.f32 %v1433, %v2489
          %v2522 = vmul.f32 %v1434, %v2490
          %v2523 = vmul.f32 %v1435, %v2491
          %v2524 = vmul.f32 %v1436, %v2492
          %v2525 = vmul.f32 %v1437, %v2493
          %v2526 = vmul.f32 %v1438, %v2494
          %v2527 = vmul.f32 %v1439, %v2495
          %v2528 = vmul.f32 %v1440, %v2496
          %v2529 = vmul.f32 %v1441, %v2497
          %v2530 = vmul.f32 %v1442, %v2498
          %v2531 = vmul.f32 %v1443, %v2499
          %v2532 = vmul.f32 %v1444, %v2500
          %v2533 = vmul.f32 %v1445, %v2501
          %v2534 = vmul.f32 %v1446, %v2502
          %v2535 = vmul.f32 %v1447, %v2503
          %v2536 = vmul.f32 %v1448, %v2504
          %v2537 = vmul.f32 %v1449, %v2505
          %v2538 = vadd.f32 %v2506, 1.0
          %v2539 = vadd.f32 %v2507, 1.0
          %v2540 = vadd.f32 %v2508, 1.0
          %v2541 = vadd.f32 %v2509, 1.0
          %v2542 = vadd.f32 %v2510, 1.0
          %v2543 = vadd.f32 %v2511, 1.0
          %v2544 = vadd.f32 %v2512, 1.0
          %v2545 = vadd.f32 %v2513, 1.0
          %v2546 = vadd.f32 %v2514, 1.0
          %v2547 = vadd.f32 %v2515, 1.0
          %v2548 = vadd.f32 %v2516, 1.0
          %v2549 = vadd.f32 %v2517, 1.0
          %v2550 = vadd.f32 %v2518, 1.0
          %v2551 = vadd.f32 %v2519, 1.0
          %v2552 = vadd.f32 %v2520, 1.0
          %v2553 = vadd.f32 %v2521, 1.0
          %v2554 = vadd.f32 %v2522, 1.0
          %v2555 = vadd.f32 %v2523, 1.0
          %v2556 = vadd.f32 %v2524, 1.0
          %v2557 = vadd.f32 %v2525, 1.0
          %v2558 = vadd.f32 %v2526, 1.0
          %v2559 = vadd.f32 %v2527, 1.0
          %v2560 = vadd.f32 %v2528, 1.0
          %v2561 = vadd.f32 %v2529, 1.0
          %v2562 = vadd.f32 %v2530, 1.0
          %v2563 = vadd.f32 %v2531, 1.0
          %v2564 = vadd.f32 %v2532, 1.0
          %v2565 = vadd.f32 %v2533, 1.0
          %v2566 = vadd.f32 %v2534, 1.0
          %v2567 = vadd.f32 %v2535, 1.0
          %v2568 = vadd.f32 %v2536, 1.0
          %v2569 = vadd.f32 %v2537, 1.0
          %v2570 = vmul.f32 %v1322, %v2538
          %v2571 = vmul.f32 %v1323, %v2539
          %v2572 = vmul.f32 %v1324, %v2540
          %v2573 = vmul.f32 %v1325, %v2541
          %v2574 = vmul.f32 %v1326, %v2542
          %v2575 = vmul.f32 %v1327, %v2543
          %v2576 = vmul.f32 %v1328, %v2544
          %v2577 = vmul.f32 %v1329, %v2545
          %v2578 = vmul.f32 %v1330, %v2546
          %v2579 = vmul.f32 %v1331, %v2547
          %v2580 = vmul.f32 %v1332, %v2548
          %v2581 = vmul.f32 %v1333, %v2549
          %v2582 = vmul.f32 %v1334, %v2550
          %v2583 = vmul.f32 %v1335, %v2551
          %v2584 = vmul.f32 %v1336, %v2552
          %v2585 = vmul.f32 %v1337, %v2553
          %v2586 = vmul.f32 %v1338, %v2554
          %v2587 = vmul.f32 %v1339, %v2555
          %v2588 = vmul.f32 %v1340, %v2556
          %v2589 = vmul.f32 %v1341, %v2557
          %v2590 = vmul.f32 %v1342, %v2558
          %v2591 = vmul.f32 %v1343, %v2559
          %v2592 = vmul.f32 %v1344, %v2560
          %v2593 = vmul.f32 %v1345, %v2561
          %v2594 = vmul.f32 %v1346, %v2562
          %v2595 = vmul.f32 %v1347, %v2563
          %v2596 = vmul.f32 %v1348, %v2564
          %v2597 = vmul.f32 %v1349, %v2565
          %v2598 = vmul.f32 %v1350, %v2566
          %v2599 = vmul.f32 %v1351, %v2567
          %v2600 = vmul.f32 %v1352, %v2568
          %v2601 = vmul.f32 %v1353, %v2569
          %2602 = vst [vmem:[%s293] sm:$0xff] %v2570
          %2603 = vst [vmem:[%s293 + $0x8] sm:$0xff] %v2571
          %2604 = vst [vmem:[%s293 + $0x10] sm:$0xff] %v2572
          %2605 = vst [vmem:[%s293 + $0x18] sm:$0xff] %v2573
          %2606 = vst [vmem:[%s293 + $0x20] sm:$0xff] %v2574
          %2607 = vst [vmem:[%s293 + $0x28] sm:$0xff] %v2575
          %2608 = vst [vmem:[%s293 + $0x30] sm:$0xff] %v2576
          %2609 = vst [vmem:[%s293 + $0x38] sm:$0xff] %v2577
          %2610 = vst [vmem:[%s293 + $0x40] sm:$0xff] %v2578
          %2611 = vst [vmem:[%s293 + $0x48] sm:$0xff] %v2579
          %2612 = vst [vmem:[%s293 + $0x50] sm:$0xff] %v2580
          %2613 = vst [vmem:[%s293 + $0x58] sm:$0xff] %v2581
          %2614 = vst [vmem:[%s293 + $0x60] sm:$0xff] %v2582
          %2615 = vst [vmem:[%s293 + $0x68] sm:$0xff] %v2583
          %2616 = vst [vmem:[%s293 + $0x70] sm:$0xff] %v2584
          %2617 = vst [vmem:[%s293 + $0x78] sm:$0xff] %v2585
          %2618 = vst [vmem:[%s293 + $0x80] sm:$0xff] %v2586
          %2619 = vst [vmem:[%s293 + $0x88] sm:$0xff] %v2587
          %2620 = vst [vmem:[%s293 + $0x90] sm:$0xff] %v2588
          %2621 = vst [vmem:[%s293 + $0x98] sm:$0xff] %v2589
          %2622 = vst [vmem:[%s293 + $0xa0] sm:$0xff] %v2590
          %2623 = vst [vmem:[%s293 + $0xa8] sm:$0xff] %v2591
          %2624 = vst [vmem:[%s293 + $0xb0] sm:$0xff] %v2592
          %2625 = vst [vmem:[%s293 + $0xb8] sm:$0xff] %v2593
          %2626 = vst [vmem:[%s293 + $0xc0] sm:$0xff] %v2594
          %2627 = vst [vmem:[%s293 + $0xc8] sm:$0xff] %v2595
          %2628 = vst [vmem:[%s293 + $0xd0] sm:$0xff] %v2596
          %2629 = vst [vmem:[%s293 + $0xd8] sm:$0xff] %v2597
          %2630 = vst [vmem:[%s293 + $0xe0] sm:$0xff] %v2598
          %2631 = vst [vmem:[%s293 + $0xe8] sm:$0xff] %v2599
          %2632 = vst [vmem:[%s293 + $0xf0] sm:$0xff] %v2600
          %2633 = vst [vmem:[%s293 + $0xf8] sm:$0xff] %v2601
        $region52: #{_padded_matmul.1} parent=35 // pred_fallthru
          _
        %s2634 = sand.u32 %s159, 1
        %s2635 = scalar_lea.sflag [#allocation5], %s2634
        %s2636 = sand.u32 %s159, 1
        %s2637 = smul.addr %s2636, 256
        %s2638 = scalar_lea.vmem [#allocation8], %s2637
        // Predicated region
        $region53: #{_padded_matmul.1} parent=35 // pred_check
          %p2639 = pneg %p169
        $region54: #{_padded_matmul.1} parent=35 // pred_check_branch
          %2641 = sbr.rel (%p2639) target = $region56
        $region55: #{_padded_matmul.1} parent=35 // pred_region
          %s2642 = smul.u32 32, %s27
          %2644 = vsyncadd %s2635, 0
          %s2645 = sadd.s32 %s28, %s2642
          %s2646 = smul.addr %s2645, 8
          %s2647 = scalar_lea.hbm %s4, %s2646
          %s2648 = sshll.u32 %s2638, 4
          %s2649 = int_to_ptr.vmem [resolvable:$true] %s2648
          %s2650 = sshll.u32 %s2647, 4
          %s2651 = int_to_ptr.hbm [resolvable:$true] %s2650
          %2656 = dma.vmem_to_hbm [thread:$0]  %s2649, 4096, %s2651, %s2635, 128, 128, 8
        $region56: #{_padded_matmul.1} parent=35 // pred_fallthru
          _
      $region36: #{_padded_matmul.1} parent=5 // pred_fallthru
        _
      %p2657 = scmp.le.s32.totalorder 2, %s17
      // Predicated region
      $region57: #{_padded_matmul.1} parent=5 // pred_check
        %p2658 = pneg %p2657
      $region58: #{_padded_matmul.1} parent=5 // pred_check_branch
        %2660 = sbr.rel (%p2658) target = $region60
      $region59: #{_padded_matmul.1} parent=5 // pred_region
        %s2661 = ssub.s32 %s17, 2
        // Predicated region
        $region61: #{_padded_matmul.1} parent=59 // pred_check
          %p2662 = pneg %p175
        $region62: #{_padded_matmul.1} parent=59 // pred_check_branch
          %2664 = sbr.rel (%p2662) target = $region64
        $region63: #{_padded_matmul.1} parent=59 // pred_region
          %s2665 = sand.u32 %s160, 1
          %s2666 = scalar_lea.sflag [#allocation5], %s2665
          %s2667 = sand.u32 %s160, 1
          %s2668 = smul.addr %s2667, 256
          %s2669 = scalar_lea.vmem [#allocation8], %s2668
          %2671 = dma.done %s2666, 4096
        $region64: #{_padded_matmul.1} parent=59 // pred_fallthru
          _
      $region60: #{_padded_matmul.1} parent=5 // pred_fallthru
        _
    $region6: #{_padded_matmul.1} parent=1 // loop_footer
      %s21 = sadd.s32 1, %s17
    $region7: #{_padded_matmul.1} parent=1 // loop_footer_branch
      %16 = sbr.rel target = $region3
    $region8: #{_padded_matmul.1} parent=1 // loop_exit
      _
    %2672 = vsyncpa [#allocation4], 1
    %s2673 = scalar_lea.sflag [#allocation4], 1
    %2674 = vsyncpa %s2673, 1
    %2675 = vsyncpa [#allocation7], 1
    %2676 = vsyncpa [#allocation5], 1
    %s2677 = scalar_lea.sflag [#allocation5], 1
    %2678 = vsyncpa %s2677, 1

</llo_original>
